<compile_context>
chip_gen: v5e
topology: v5e:2x2
jax: 0.10.0
libtpu: 0.0.40
codegen_flags: <defaults>
</compile_context>

<pallas_src>
import jax
import jax.numpy as jnp
from jax import lax
from jax.experimental import pallas as pl
from jax.experimental.pallas import tpu as pltpu

_VMEM_LIMIT = 48 * 1024 * 1024  # leaves headroom on v7x (64 MiB physical / TC)


def _round_up(n, m):
    return ((n + m - 1) // m) * m


# ----------------------------------------------------------------------------
# Kernel 1: fused aug/th logits + ATLOP loss + neg (mixup) loss partials.
#
#   logits[i, r] = || relu(x_i @ W1_top + ma[r]) @ W2 + b2 ||_2
#   ma[r] = mem_ext[r] @ W1_bot + b1   (precomputed in the wrapper; row nl is
#                                       the all-zero 'th' slot -> ma[nl] = b1)
#
# The logits tile lives only in a (C_pad, tile) VMEM scratch (labels on the
# sublane axis); the kernel emits a single (1, 128) partial-sum row per tile:
#   lane 0: sum over x-rows of the ATLOP loss
#   lane 1: weighted sum over mixed rows of (logsumexp(row) - row[th])
# ----------------------------------------------------------------------------
def _make_fused_kernel(num_labels, label_chunk, c_pad, two_f, out_dim):
    nl = num_labels            # index of the 'th' column; cols 0..nl are valid
    G = label_chunk

    def kernel(x_ref, ma_ref, w1_ref, w2_ref, b2_ref,
               lb_ref, wat_ref, wng_ref, part_ref, z_ref):
        tile = x_ref.shape[0]

        # First layer, x part only (bf16 MXU, f32 accumulation).
        xa = jnp.dot(x_ref[...], w1_ref[...],
                     preferred_element_type=jnp.float32)           # (tile, 2F)
        w2 = w2_ref[...]                                            # (2F, 32) bf16
        b2 = b2_ref[...]                                            # (1, 32) f32

        n_chunks = c_pad // G

        def chunk_at(start):
            ma_c = ma_ref[pl.ds(start, G), :]                       # (G, 2F) f32
            h3 = jnp.maximum(xa[None, :, :] + ma_c[:, None, :], 0.0)
            h2 = h3.reshape(G * tile, two_f).astype(jnp.bfloat16)   # leading-dim reshape
            o2 = jnp.dot(h2, w2, preferred_element_type=jnp.float32) + b2
            o3 = o2.reshape(G, tile, out_dim)
            # Per-(label, row) L2 norms land with rows on lanes -> dense store.
            z_ref[pl.ds(start, G), :] = jnp.sqrt(jnp.sum(o3 * o3, axis=-1))

        if n_chunks == 1:
            chunk_at(0)
        else:
            def chunk_body(g, carry):
                chunk_at(pl.multiple_of(g * G, G))
                return carry
            lax.fori_loop(0, n_chunks, chunk_body, 0, unroll=n_chunks <= 8)

        # ---- fused loss epilogue (label axis = sublanes, rows = lanes) ----
        z = z_ref[...]                                              # (C_pad, tile)
        lbv = lb_ref[...]                                           # (1, tile) f32, -1 = not an x row
        wat = wat_ref[...]                                          # 1 for x rows
        wng = wng_ref[...]                                          # sel for mixed rows

        cid = lax.broadcasted_iota(jnp.int32, (c_pad, tile), 0)
        lbi = lbv.astype(jnp.int32)
        labels = jnp.where((cid == lbi) & (lbi >= 0), 1.0, 0.0) * wat
        th = jnp.where(cid == nl, 1.0, 0.0) * wat
        valid = cid <= nl                                           # real label cols

        def log_softmax_cols(zm):
            m = jnp.max(zm, axis=0, keepdims=True)
            return zm - (m + jnp.log(jnp.sum(jnp.exp(zm - m), axis=0, keepdims=True)))

        p_mask = labels + th
        n_mask = jnp.where(valid, 1.0 - labels, 0.0)
        ls1 = log_softmax_cols(jnp.where(p_mask > 0.0, z, -1e30))
        ls2 = log_softmax_cols(jnp.where(n_mask > 0.0, z, -1e30))
        atlop_rows = -(jnp.sum(ls1 * labels, axis=0, keepdims=True)
                       + jnp.sum(ls2 * th, axis=0, keepdims=True))  # (1, tile)

        zv = jnp.where(valid, z, -1e30)
        m = jnp.max(zv, axis=0, keepdims=True)
        lse = m + jnp.log(jnp.sum(jnp.exp(zv - m), axis=0, keepdims=True))
        neg_rows = (lse - z[nl:nl + 1, :]) * wng                    # (1, tile)

        atlop_sum = jnp.sum(atlop_rows)
        neg_sum = jnp.sum(neg_rows)
        lane = lax.broadcasted_iota(jnp.int32, (1, 128), 1)
        part_ref[...] = (jnp.where(lane == 0, atlop_sum, 0.0)
                         + jnp.where(lane == 1, neg_sum, 0.0))

    return kernel


def fused_aug_losses(params, x, mix_x, lb, sel, *, tile=128, label_chunk=8):
    """Returns (loss1, loss3): ATLOP proxy loss over x rows and the mixup neg loss.

    x and mix_x are stacked into one (2B, F) call; the (B, L+1) logits never
    leave VMEM. tile/label_chunk are VMEM knobs: at production F, sweep
    tile in {128, 256} (v5e: 16 MiB default scoped VMEM; v7x: 64 MiB physical).
    """
    b, f = x.shape
    mem = params["mem"]
    nl = mem.shape[0]
    two_f = 2 * f
    out_dim = params["w2t"].shape[1]
    G = label_chunk
    c_pad = _round_up(nl + 1, G)

    # Hoisted, grid-invariant memory path of the first linear layer.
    mem_ext = jnp.concatenate([mem, jnp.zeros((1, f), jnp.float32)], axis=0)
    w1_top = params["w1t"][:f, :]
    w1_bot = params["w1t"][f:, :]
    ma = jnp.dot(mem_ext, w1_bot) + params["b1"]                    # (nl+1, 2F)
    ma = jnp.pad(ma, ((0, c_pad - (nl + 1)), (0, 0)))               # padded cols are masked out

    xs = jnp.concatenate([x, mix_x], axis=0)                        # (2B, F)
    n = xs.shape[0]
    n_pad = _round_up(n, 16)
    tile = min(tile, n_pad)
    n_pad = _round_up(n_pad, tile)

    xs_p = jnp.pad(xs, ((0, n_pad - n), (0, 0))).astype(jnp.bfloat16)
    lbv = jnp.pad(jnp.concatenate([lb.astype(jnp.float32),
                                   jnp.full((b,), -1.0, jnp.float32)]),
                  (0, n_pad - n), constant_values=-1.0)[None, :]
    wat = jnp.pad(jnp.concatenate([jnp.ones((b,), jnp.float32),
                                   jnp.zeros((b,), jnp.float32)]),
                  (0, n_pad - n))[None, :]
    wng = jnp.pad(jnp.concatenate([jnp.zeros((b,), jnp.float32), sel]),
                  (0, n_pad - n))[None, :]

    num_tiles = n_pad // tile
    kernel = _make_fused_kernel(nl, G, c_pad, two_f, out_dim)

    partials = pl.pallas_call(
        kernel,
        out_shape=jax.ShapeDtypeStruct((num_tiles, 128), jnp.float32),
        grid=(num_tiles,),
        in_specs=[
            pl.BlockSpec((tile, f), lambda i: (i, 0)),              # x rows (bf16)
            pl.BlockSpec((c_pad, two_f), lambda i: (0, 0)),         # ma (f32, invariant)
            pl.BlockSpec((f, two_f), lambda i: (0, 0)),             # W1_top (bf16, invariant)
            pl.BlockSpec((two_f, out_dim), lambda i: (0, 0)),       # W2^T (bf16, invariant)
            pl.BlockSpec((1, out_dim), lambda i: (0, 0)),           # b2
            pl.BlockSpec((1, tile), lambda i: (0, i)),              # label id per row
            pl.BlockSpec((1, tile), lambda i: (0, i)),              # ATLOP row weight
            pl.BlockSpec((1, tile), lambda i: (0, i)),              # neg row weight
        ],
        out_specs=pl.BlockSpec((1, 128), lambda i: (i, 0)),
        scratch_shapes=[pltpu.VMEM((c_pad, tile), jnp.float32)],
        compiler_params=pltpu.CompilerParams(
            dimension_semantics=("parallel",),
            vmem_limit_bytes=_VMEM_LIMIT),
    )(xs_p, ma, w1_top.astype(jnp.bfloat16),
      params["w2t"].astype(jnp.bfloat16), params["b2"], lbv, wat, wng)

    psum = jnp.sum(partials, axis=0)                                # (128,)
    loss1 = psum[0] / b
    cnt = jnp.sum(sel)
    loss3 = jnp.where(cnt > 0.0, psum[1] / jnp.maximum(cnt, 1.0), 0.0)
    return loss1, loss3


# ----------------------------------------------------------------------------
# Kernels 2a/2b: projection + L2 normalize (bf16 out), then 2D-tiled PML loss
# with a flash-style running logsumexp over the key axis.
# ----------------------------------------------------------------------------
def _proj_norm_kernel(x_ref, wp_ref, bp_ref, o_ref):
    lo = jnp.dot(x_ref[...], wp_ref[...],
                 preferred_element_type=jnp.float32) + bp_ref[...]
    ss = jnp.sum(lo * lo, axis=1, keepdims=True)
    o_ref[...] = (lo * lax.rsqrt(jnp.maximum(ss, 1e-24))).astype(o_ref.dtype)


def _pml_tile_kernel(loq_ref, lok_ref, lbq_ref, lbk_ref, part_ref,
                     mg_ref, lg_ref, mb_ref, lbnum_ref):
    qi = pl.program_id(0)
    ki = pl.program_id(1)

    @pl.when(ki == 0)
    def _():
        mg_ref[...] = jnp.full(mg_ref.shape, -1e30, jnp.float32)
        lg_ref[...] = jnp.zeros_like(lg_ref)
        mb_ref[...] = jnp.full(mb_ref.shape, -1e30, jnp.float32)
        lbnum_ref[...] = jnp.zeros_like(lbnum_ref)

    # Unit vectors -> d^2 = 2 - 2 * <q, k>.  bf16 MXU, f32 accumulation.
    # TODO(synk): bf16 shifts distances ~1e-3 near the 0.7/1.4 hard thresholds
    # vs. an f32 reference; switch the Gram matmul back to f32 if that matters.
    gram = lax.dot_general(loq_ref[...], lok_ref[...],
                           (((1,), (1,)), ((), ())),
                           preferred_element_type=jnp.float32)       # (tq, tk)
    d2 = 2.0 - 2.0 * gram
    d = jnp.where(d2 <= 0.0, 0.0, jnp.sqrt(jnp.maximum(d2, 1e-16)))

    lbq = lbq_ref[...]                                               # (tq, 1), -1 = padding
    lbk = lbk_ref[...]                                               # (1, tk)
    pos = lbq == lbk
    valid = (lbq >= 0.0) & (lbk >= 0.0)
    tq, tk = d.shape
    rows = lax.broadcasted_iota(jnp.int32, d.shape, 0) + qi * tq
    cols = lax.broadcasted_iota(jnp.int32, d.shape, 1) + ki * tk
    offdiag = rows != cols

    keep_g = (pos & offdiag & (d > 0.7) & valid).astype(jnp.float32)
    keep_b = (jnp.logical_not(pos) & (d < 1.4) & valid).astype(jnp.float32)
    gama = ((d - 0.7) ** 2) * 50.0
    beta = ((1.4 - d) ** 2) * 50.0

    def online_update(m_ref, l_ref, vals, keep):
        xm = jnp.where(keep > 0.0, vals, -1e30)
        m_new = jnp.maximum(m_ref[...], jnp.max(xm, axis=1, keepdims=True))
        p = jnp.exp(xm - m_new) * keep
        l_ref[...] = (l_ref[...] * jnp.exp(m_ref[...] - m_new)
                      + jnp.sum(p, axis=1, keepdims=True))
        m_ref[...] = m_new

    online_update(mg_ref, lg_ref, gama, keep_g)
    online_update(mb_ref, lbnum_ref, beta, keep_b)

    @pl.when(ki == pl.num_programs(1) - 1)
    def _():
        def finalize(m_ref, l_ref):
            l = l_ref[...]
            has = l > 0.0
            lse = jnp.where(has, m_ref[...] + jnp.log(jnp.maximum(l, 1e-30)), 0.0)
            return jnp.sum(lse), jnp.sum(has.astype(jnp.float32))

        sum_g, cnt_g = finalize(mg_ref, lg_ref)
        sum_b, cnt_b = finalize(mb_ref, lbnum_ref)
        lane = lax.broadcasted_iota(jnp.int32, (1, 128), 1)
        part_ref[...] = (jnp.where(lane == 0, sum_g, 0.0)
                         + jnp.where(lane == 1, cnt_g, 0.0)
                         + jnp.where(lane == 2, sum_b, 0.0)
                         + jnp.where(lane == 3, cnt_b, 0.0))


def pml_loss_fn(params, x, lb, *, tile=256):
    b, f = x.shape
    d = params["wpt"].shape[1]
    n_pad = _round_up(b, 16)
    tile = min(tile, n_pad)
    n_pad = _round_up(n_pad, tile)

    x_p = jnp.pad(x, ((0, n_pad - b), (0, 0))).astype(jnp.bfloat16)
    lb_f = jnp.pad(lb.astype(jnp.float32), (0, n_pad - b), constant_values=-1.0)

    nt = n_pad // tile
    lo = pl.pallas_call(
        _proj_norm_kernel,
        out_shape=jax.ShapeDtypeStruct((n_pad, d), jnp.bfloat16),
        grid=(nt,),
        in_specs=[
            pl.BlockSpec((tile, f), lambda i: (i, 0)),
            pl.BlockSpec((f, d), lambda i: (0, 0)),
            pl.BlockSpec((1, d), lambda i: (0, 0)),
        ],
        out_specs=pl.BlockSpec((tile, d), lambda i: (i, 0)),
        compiler_params=pltpu.CompilerParams(
            dimension_semantics=("parallel",),
            vmem_limit_bytes=_VMEM_LIMIT),
    )(x_p, params["wpt"].astype(jnp.bfloat16), params["bp"])

    partials = pl.pallas_call(
        _pml_tile_kernel,
        out_shape=jax.ShapeDtypeStruct((nt, 128), jnp.float32),
        grid=(nt, nt),
        in_specs=[
            pl.BlockSpec((tile, d), lambda q, k: (q, 0)),
            pl.BlockSpec((tile, d), lambda q, k: (k, 0)),
            pl.BlockSpec((tile, 1), lambda q, k: (q, 0)),
            pl.BlockSpec((1, tile), lambda q, k: (0, k)),
        ],
        out_specs=pl.BlockSpec((1, 128), lambda q, k: (q, 0)),
        scratch_shapes=[pltpu.VMEM((tile, 1), jnp.float32)] * 4,
        compiler_params=pltpu.CompilerParams(
            dimension_semantics=("parallel", "arbitrary"),
            vmem_limit_bytes=_VMEM_LIMIT),
    )(lo, lo, lb_f[:, None], lb_f[None, :])

    psum = jnp.sum(partials, axis=0)
    sum_g, cnt_g, sum_b, cnt_b = psum[0], psum[1], psum[2], psum[3]
    loss_g = jnp.where(cnt_g > 0.0, sum_g / jnp.maximum(cnt_g, 1.0), 0.0)
    loss_b = jnp.where(cnt_b > 0.0, sum_b / jnp.maximum(cnt_b, 1.0), 0.0)
    return loss_g + loss_b


# ----------------------------------------------------------------------------
# Parameter init (deterministic, synthetic). Weights stored pre-transposed so
# kernels compute x @ W^T directly.
# ----------------------------------------------------------------------------
def init_params(key, in_feats, num_labels, out_dim=32):
    ks = jax.random.split(key, 7)
    two_f = 2 * in_feats
    return {
        "mem": jax.random.normal(ks[0], (num_labels, in_feats), jnp.float32),
        "w1t": jax.random.normal(ks[1], (two_f, two_f), jnp.float32) * 0.1,
        "b1": jax.random.normal(ks[2], (1, two_f), jnp.float32) * 0.1,
        "w2t": jax.random.normal(ks[3], (two_f, out_dim), jnp.float32) * 0.1,
        "b2": jax.random.normal(ks[4], (1, out_dim), jnp.float32) * 0.1,
        "wpt": jax.random.normal(ks[5], (in_feats, out_dim), jnp.float32) * 0.1,
        "bp": jax.random.normal(ks[6], (1, out_dim), jnp.float32) * 0.1,
    }


# ----------------------------------------------------------------------------
# Forward-pass glue (mirrors AdaptiveClassifier.forward with neg=None).
# Fully jittable: the mixup selection uses a fixed-shape 0/1 row mask.
# ----------------------------------------------------------------------------
def adaptive_classifier_forward(params, x, lb, mix_key):
    b = x.shape[0]

    # ---- manifold mixup (device-side) ----
    # TODO(synk): torch uses host-side np.random.shuffle + Beta.sample; replaced
    # with jax.random so the whole forward stays jittable (different RNG stream).
    kp, ka = jax.random.split(mix_key)
    perm = jax.random.permutation(kp, b)
    alpha = jax.random.beta(ka, 2.0, 2.0)
    sel = (lb[perm] != lb).astype(jnp.float32)           # rows that get mixed
    mix_x = alpha * x[perm] + (1.0 - alpha) * x

    # ---- loss1 (pos_adapate_loss_with_proxy) + loss3 (neg_adapte_loss), fused ----
    loss1, loss3 = fused_aug_losses(params, x, mix_x, lb, sel)

    # ---- loss2: PML loss on the normalized projection ----
    loss2 = pml_loss_fn(params, x, lb)

    # ---- loss4: neg is None in this forward ----
    loss4 = jnp.float32(0.0)
    return loss1 + loss2 + loss3 + loss4


if __name__ == "__main__":
    B, IN_FEATS, NUM_LABELS = 8, 32, 4

    key = jax.random.PRNGKey(0)
    kx, kl = jax.random.split(key)
    x = jax.random.normal(kx, (B, IN_FEATS), jnp.float32)
    lb = jax.random.randint(kl, (B,), 0, NUM_LABELS)
    params = init_params(jax.random.PRNGKey(42), IN_FEATS, NUM_LABELS)

    fwd = jax.jit(adaptive_classifier_forward)
    loss = fwd(params, x, lb, jax.random.PRNGKey(7))
    jax.block_until_ready(loss)
    assert jnp.isfinite(loss)
    print("KERNEL_OK")
</pallas_src>

<mosaic_0001>
module attributes {stable_mosaic.version = 11 : i64} {
  func.func @kernel(%arg0: i32, %arg1: memref<16x32xbf16, #tpu.memory_space<vmem>>, %arg2: memref<8x64xf32, #tpu.memory_space<vmem>>, %arg3: memref<32x64xbf16, #tpu.memory_space<vmem>>, %arg4: memref<64x32xbf16, #tpu.memory_space<vmem>>, %arg5: memref<1x32xf32, #tpu.memory_space<vmem>>, %arg6: memref<1x16xf32, #tpu.memory_space<vmem>>, %arg7: memref<1x16xf32, #tpu.memory_space<vmem>>, %arg8: memref<1x16xf32, #tpu.memory_space<vmem>>, %arg9: memref<1x128xf32, #tpu.memory_space<vmem>>, %arg10: memref<8x16xf32, #tpu.memory_space<vmem>>) attributes {dimension_semantics = [#tpu.dimension_semantics<parallel>], iteration_bounds = array<i64: 1>, scalar_prefetch = 0 : i64, scratch_operands = 1 : i64, tpu.core_type = #tpu.core_type<tc>, window_params = [{transform_indices = @transform_0, window_bounds = array<i64: 16, 32>}, {pipeline_mode = #tpu.pipeline_mode<synchronous>, transform_indices = @transform_1, window_bounds = array<i64: 8, 64>}, {pipeline_mode = #tpu.pipeline_mode<synchronous>, transform_indices = @transform_2, window_bounds = array<i64: 32, 64>}, {pipeline_mode = #tpu.pipeline_mode<synchronous>, transform_indices = @transform_3, window_bounds = array<i64: 64, 32>}, {pipeline_mode = #tpu.pipeline_mode<synchronous>, transform_indices = @transform_4, window_bounds = array<i64: 1, 32>}, {transform_indices = @transform_5, window_bounds = array<i64: 1, 16>}, {transform_indices = @transform_6, window_bounds = array<i64: 1, 16>}, {transform_indices = @transform_7, window_bounds = array<i64: 1, 16>}, {transform_indices = @transform_8, window_bounds = array<i64: 1, 128>}]} {
    %c0 = arith.constant 0 : index
    %c0_0 = arith.constant 0 : index
    %0 = vector.load %arg1[%c0, %c0_0] : memref<16x32xbf16, #tpu.memory_space<vmem>>, vector<16x32xbf16>
    %c0_1 = arith.constant 0 : index
    %c0_2 = arith.constant 0 : index
    %1 = vector.load %arg3[%c0_1, %c0_2] : memref<32x64xbf16, #tpu.memory_space<vmem>>, vector<32x64xbf16>
    %cst = arith.constant dense<0.000000e+00> : vector<16x64xf32>
    %2 = tpu.matmul %0, %1, %cst {dimension_numbers = #tpu.dot_dimension_numbers<[1], [0], [0], [1], [0, 0, 1, 1], [], []>} : vector<16x32xbf16>, vector<32x64xbf16>, vector<16x64xf32> -> vector<16x64xf32>
    %c0_3 = arith.constant 0 : index
    %c0_4 = arith.constant 0 : index
    %3 = vector.load %arg4[%c0_3, %c0_4] : memref<64x32xbf16, #tpu.memory_space<vmem>>, vector<64x32xbf16>
    %c0_5 = arith.constant 0 : index
    %c0_6 = arith.constant 0 : index
    %4 = vector.load %arg5[%c0_5, %c0_6] : memref<1x32xf32, #tpu.memory_space<vmem>>, vector<1x32xf32>
    %c0_7 = arith.constant 0 : index
    %c0_8 = arith.constant 0 : index
    %5 = vector.load %arg2[%c0_7, %c0_8] : memref<8x64xf32, #tpu.memory_space<vmem>>, vector<8x64xf32>
    %6 = vector.shape_cast %2 : vector<16x64xf32> to vector<1x16x64xf32>
    %7 = vector.shape_cast %5 : vector<8x64xf32> to vector<8x1x64xf32>
    %8 = vector.broadcast %6 : vector<1x16x64xf32> to vector<8x16x64xf32>
    %9 = vector.broadcast %7 : vector<8x1x64xf32> to vector<8x16x64xf32>
    %10 = arith.addf %8, %9 : vector<8x16x64xf32>
    %cst_9 = arith.constant 0.000000e+00 : f32
    %11 = vector.broadcast %cst_9 : f32 to vector<8x16x64xf32>
    %12 = arith.maximumf %10, %11 : vector<8x16x64xf32>
    %13 = vector.shape_cast %12 : vector<8x16x64xf32> to vector<128x64xf32>
    %14 = arith.truncf %13 : vector<128x64xf32> to vector<128x64xbf16>
    %cst_10 = arith.constant dense<0.000000e+00> : vector<128x32xf32>
    %15 = tpu.matmul %14, %3, %cst_10 {dimension_numbers = #tpu.dot_dimension_numbers<[1], [0], [0], [1], [0, 0, 1, 1], [], []>} : vector<128x64xbf16>, vector<64x32xbf16>, vector<128x32xf32> -> vector<128x32xf32>
    %16 = vector.broadcast %4 : vector<1x32xf32> to vector<128x32xf32>
    %17 = arith.addf %15, %16 : vector<128x32xf32>
    %18 = vector.shape_cast %17 : vector<128x32xf32> to vector<8x16x32xf32>
    %19 = arith.mulf %18, %18 : vector<8x16x32xf32>
    %cst_11 = arith.constant dense<0.000000e+00> : vector<8x16xf32>
    %20 = vector.multi_reduction <add>, %19, %cst_11 [2] : vector<8x16x32xf32> to vector<8x16xf32>
    %21 = math.sqrt %20 : vector<8x16xf32>
    %c0_12 = arith.constant 0 : index
    %c0_13 = arith.constant 0 : index
    %22 = vector.load %arg10[%c0_12, %c0_13] : memref<8x16xf32, #tpu.memory_space<vmem>>, vector<8x16xf32>
    tpu.vector_store %arg10[%c0_12, %c0_13], %21 {strides = array<i32>} : memref<8x16xf32, #tpu.memory_space<vmem>>, vector<8x16xf32>,
    %c0_14 = arith.constant 0 : index
    %c0_15 = arith.constant 0 : index
    %23 = vector.load %arg10[%c0_14, %c0_15] : memref<8x16xf32, #tpu.memory_space<vmem>>, vector<8x16xf32>
    %c0_16 = arith.constant 0 : index
    %c0_17 = arith.constant 0 : index
    %24 = vector.load %arg6[%c0_16, %c0_17] : memref<1x16xf32, #tpu.memory_space<vmem>>, vector<1x16xf32>
    %c0_18 = arith.constant 0 : index
    %c0_19 = arith.constant 0 : index
    %25 = vector.load %arg7[%c0_18, %c0_19] : memref<1x16xf32, #tpu.memory_space<vmem>>, vector<1x16xf32>
    %c0_20 = arith.constant 0 : index
    %c0_21 = arith.constant 0 : index
    %26 = vector.load %arg8[%c0_20, %c0_21] : memref<1x16xf32, #tpu.memory_space<vmem>>, vector<1x16xf32>
    %27 = tpu.iota {dimensions = array<i32: 0>} : vector<8x16xi32>
    %28 = arith.fptosi %24 : vector<1x16xf32> to vector<1x16xi32>
    %29 = vector.broadcast %28 : vector<1x16xi32> to vector<8x16xi32>
    %30 = arith.cmpi eq, %27, %29 : vector<8x16xi32>
    %c0_i32 = arith.constant 0 : i32
    %31 = vector.broadcast %c0_i32 : i32 to vector<1x16xi32>
    %32 = arith.cmpi sge, %28, %31 : vector<1x16xi32>
    %33 = vector.broadcast %32 : vector<1x16xi1> to vector<8x16xi1>
    %34 = arith.andi %30, %33 : vector<8x16xi1>
    %cst_22 = arith.constant 1.000000e+00 : f32
    %cst_23 = arith.constant 0.000000e+00 : f32
    %35 = vector.broadcast %cst_22 : f32 to vector<8x16xf32>
    %36 = vector.broadcast %cst_23 : f32 to vector<8x16xf32>
    %37 = arith.select %34, %35, %36 : vector<8x16xi1>, vector<8x16xf32>
    %38 = vector.broadcast %25 : vector<1x16xf32> to vector<8x16xf32>
    %39 = arith.mulf %37, %38 : vector<8x16xf32>
    %c4_i32 = arith.constant 4 : i32
    %40 = vector.broadcast %c4_i32 : i32 to vector<8x16xi32>
    %41 = arith.cmpi eq, %27, %40 : vector<8x16xi32>
    %cst_24 = arith.constant 1.000000e+00 : f32
    %cst_25 = arith.constant 0.000000e+00 : f32
    %42 = vector.broadcast %cst_24 : f32 to vector<8x16xf32>
    %43 = vector.broadcast %cst_25 : f32 to vector<8x16xf32>
    %44 = arith.select %41, %42, %43 : vector<8x16xi1>, vector<8x16xf32>
    %45 = vector.broadcast %25 : vector<1x16xf32> to vector<8x16xf32>
    %46 = arith.mulf %44, %45 : vector<8x16xf32>
    %c4_i32_26 = arith.constant 4 : i32
    %47 = vector.broadcast %c4_i32_26 : i32 to vector<8x16xi32>
    %48 = arith.cmpi sle, %27, %47 : vector<8x16xi32>
    %49 = arith.addf %39, %46 : vector<8x16xf32>
    %cst_27 = arith.constant 1.000000e+00 : f32
    %50 = vector.broadcast %cst_27 : f32 to vector<8x16xf32>
    %51 = arith.subf %50, %39 : vector<8x16xf32>
    %cst_28 = arith.constant 0.000000e+00 : f32
    %52 = vector.broadcast %cst_28 : f32 to vector<8x16xf32>
    %53 = arith.select %48, %51, %52 : vector<8x16xi1>, vector<8x16xf32>
    %cst_29 = arith.constant 0.000000e+00 : f32
    %54 = vector.broadcast %cst_29 : f32 to vector<8x16xf32>
    %55 = arith.cmpf ogt, %49, %54 : vector<8x16xf32>
    %cst_30 = arith.constant -1.000000e+30 : f32
    %56 = vector.broadcast %cst_30 : f32 to vector<8x16xf32>
    %57 = arith.select %55, %23, %56 : vector<8x16xi1>, vector<8x16xf32>
    %cst_31 = arith.constant dense<0xFF800000> : vector<16xf32>
    %58 = vector.multi_reduction <maximumf>, %57, %cst_31 [0] : vector<8x16xf32> to vector<16xf32>
    %59 = vector.shape_cast %58 : vector<16xf32> to vector<1x16xf32>
    %60 = vector.broadcast %59 : vector<1x16xf32> to vector<8x16xf32>
    %61 = arith.subf %57, %60 : vector<8x16xf32>
    %62 = math.exp %61 : vector<8x16xf32>
    %cst_32 = arith.constant dense<0.000000e+00> : vector<16xf32>
    %63 = vector.multi_reduction <add>, %62, %cst_32 [0] : vector<8x16xf32> to vector<16xf32>
    %64 = vector.shape_cast %63 : vector<16xf32> to vector<1x16xf32>
    %65 = math.log %64 : vector<1x16xf32>
    %66 = arith.addf %59, %65 : vector<1x16xf32>
    %67 = vector.broadcast %66 : vector<1x16xf32> to vector<8x16xf32>
    %68 = arith.subf %57, %67 : vector<8x16xf32>
    %cst_33 = arith.constant 0.000000e+00 : f32
    %69 = vector.broadcast %cst_33 : f32 to vector<8x16xf32>
    %70 = arith.cmpf ogt, %53, %69 : vector<8x16xf32>
    %cst_34 = arith.constant -1.000000e+30 : f32
    %71 = vector.broadcast %cst_34 : f32 to vector<8x16xf32>
    %72 = arith.select %70, %23, %71 : vector<8x16xi1>, vector<8x16xf32>
    %cst_35 = arith.constant dense<0xFF800000> : vector<16xf32>
    %73 = vector.multi_reduction <maximumf>, %72, %cst_35 [0] : vector<8x16xf32> to vector<16xf32>
    %74 = vector.shape_cast %73 : vector<16xf32> to vector<1x16xf32>
    %75 = vector.broadcast %74 : vector<1x16xf32> to vector<8x16xf32>
    %76 = arith.subf %72, %75 : vector<8x16xf32>
    %77 = math.exp %76 : vector<8x16xf32>
    %cst_36 = arith.constant dense<0.000000e+00> : vector<16xf32>
    %78 = vector.multi_reduction <add>, %77, %cst_36 [0] : vector<8x16xf32> to vector<16xf32>
    %79 = vector.shape_cast %78 : vector<16xf32> to vector<1x16xf32>
    %80 = math.log %79 : vector<1x16xf32>
    %81 = arith.addf %74, %80 : vector<1x16xf32>
    %82 = vector.broadcast %81 : vector<1x16xf32> to vector<8x16xf32>
    %83 = arith.subf %72, %82 : vector<8x16xf32>
    %84 = arith.mulf %68, %39 : vector<8x16xf32>
    %cst_37 = arith.constant dense<0.000000e+00> : vector<16xf32>
    %85 = vector.multi_reduction <add>, %84, %cst_37 [0] : vector<8x16xf32> to vector<16xf32>
    %86 = vector.shape_cast %85 : vector<16xf32> to vector<1x16xf32>
    %87 = arith.mulf %83, %46 : vector<8x16xf32>
    %cst_38 = arith.constant dense<0.000000e+00> : vector<16xf32>
    %88 = vector.multi_reduction <add>, %87, %cst_38 [0] : vector<8x16xf32> to vector<16xf32>
    %89 = vector.shape_cast %88 : vector<16xf32> to vector<1x16xf32>
    %90 = arith.addf %86, %89 : vector<1x16xf32>
    %cst_39 = arith.constant 0.000000e+00 : f32
    %91 = vector.broadcast %cst_39 : f32 to vector<1x16xf32>
    %92 = arith.subf %91, %90 : vector<1x16xf32>
    %cst_40 = arith.constant -1.000000e+30 : f32
    %93 = vector.broadcast %cst_40 : f32 to vector<8x16xf32>
    %94 = arith.select %48, %23, %93 : vector<8x16xi1>, vector<8x16xf32>
    %cst_41 = arith.constant dense<0xFF800000> : vector<16xf32>
    %95 = vector.multi_reduction <maximumf>, %94, %cst_41 [0] : vector<8x16xf32> to vector<16xf32>
    %96 = vector.shape_cast %95 : vector<16xf32> to vector<1x16xf32>
    %97 = vector.broadcast %96 : vector<1x16xf32> to vector<8x16xf32>
    %98 = arith.subf %94, %97 : vector<8x16xf32>
    %99 = math.exp %98 : vector<8x16xf32>
    %cst_42 = arith.constant dense<0.000000e+00> : vector<16xf32>
    %100 = vector.multi_reduction <add>, %99, %cst_42 [0] : vector<8x16xf32> to vector<16xf32>
    %101 = vector.shape_cast %100 : vector<16xf32> to vector<1x16xf32>
    %102 = math.log %101 : vector<1x16xf32>
    %103 = arith.addf %96, %102 : vector<1x16xf32>
    %104 = vector.extract_strided_slice %23 {offsets = [4, 0], sizes = [1, 16], strides = [1, 1]} : vector<8x16xf32> to vector<1x16xf32>
    %105 = arith.subf %103, %104 : vector<1x16xf32>
    %106 = arith.mulf %105, %26 : vector<1x16xf32>
    %107 = vector.shape_cast %92 : vector<1x16xf32> to vector<1x1x16xf32>
    %cst_43 = arith.constant dense<0.000000e+00> : vector<1xf32>
    %108 = vector.multi_reduction <add>, %107, %cst_43 [1, 2] : vector<1x1x16xf32> to vector<1xf32>
    %109 = vector.shape_cast %108 : vector<1xf32> to vector<1x1x1xf32>
    %110 = vector.extract %109[0, 0, 0] : f32 from vector<1x1x1xf32>
    %111 = vector.shape_cast %106 : vector<1x16xf32> to vector<1x1x16xf32>
    %cst_44 = arith.constant dense<0.000000e+00> : vector<1xf32>
    %112 = vector.multi_reduction <add>, %111, %cst_44 [1, 2] : vector<1x1x16xf32> to vector<1xf32>
    %113 = vector.shape_cast %112 : vector<1xf32> to vector<1x1x1xf32>
    %114 = vector.extract %113[0, 0, 0] : f32 from vector<1x1x1xf32>
    %115 = tpu.iota {dimensions = array<i32: 1>} : vector<1x128xi32>
    %c0_i32_45 = arith.constant 0 : i32
    %116 = vector.broadcast %c0_i32_45 : i32 to vector<1x128xi32>
    %117 = arith.cmpi eq, %115, %116 : vector<1x128xi32>
    %cst_46 = arith.constant 0.000000e+00 : f32
    %118 = vector.broadcast %110 : f32 to vector<1x128xf32>
    %119 = vector.broadcast %cst_46 : f32 to vector<1x128xf32>
    %120 = arith.select %117, %118, %119 : vector<1x128xi1>, vector<1x128xf32>
    %c1_i32 = arith.constant 1 : i32
    %121 = vector.broadcast %c1_i32 : i32 to vector<1x128xi32>
    %122 = arith.cmpi eq, %115, %121 : vector<1x128xi32>
    %cst_47 = arith.constant 0.000000e+00 : f32
    %123 = vector.broadcast %114 : f32 to vector<1x128xf32>
    %124 = vector.broadcast %cst_47 : f32 to vector<1x128xf32>
    %125 = arith.select %122, %123, %124 : vector<1x128xi1>, vector<1x128xf32>
    %126 = arith.addf %120, %125 : vector<1x128xf32>
    %c0_48 = arith.constant 0 : index
    %c0_49 = arith.constant 0 : index
    %127 = vector.load %arg9[%c0_48, %c0_49] : memref<1x128xf32, #tpu.memory_space<vmem>>, vector<1x128xf32>
    tpu.vector_store %arg9[%c0_48, %c0_49], %126 {strides = array<i32>} : memref<1x128xf32, #tpu.memory_space<vmem>>, vector<1x128xf32>,
    return
  }
  func.func @transform_0(%arg0: i32) -> (i32, i32) {
    %c0_i32 = arith.constant 0 : i32
    %c0_i32_0 = arith.constant 0 : i32
    return %arg0, %c0_i32 : i32, i32
  }
  func.func @transform_1(%arg0: i32) -> (i32, i32) {
    %c0_i32 = arith.constant 0 : i32
    %c0_i32_0 = arith.constant 0 : i32
    %c0_i32_1 = arith.constant 0 : i32
    return %c0_i32, %c0_i32_0 : i32, i32
  }
  func.func @transform_2(%arg0: i32) -> (i32, i32) {
    %c0_i32 = arith.constant 0 : i32
    %c0_i32_0 = arith.constant 0 : i32
    %c0_i32_1 = arith.constant 0 : i32
    return %c0_i32, %c0_i32_0 : i32, i32
  }
  func.func @transform_3(%arg0: i32) -> (i32, i32) {
    %c0_i32 = arith.constant 0 : i32
    %c0_i32_0 = arith.constant 0 : i32
    %c0_i32_1 = arith.constant 0 : i32
    return %c0_i32, %c0_i32_0 : i32, i32
  }
  func.func @transform_4(%arg0: i32) -> (i32, i32) {
    %c0_i32 = arith.constant 0 : i32
    %c0_i32_0 = arith.constant 0 : i32
    %c0_i32_1 = arith.constant 0 : i32
    return %c0_i32, %c0_i32_0 : i32, i32
  }
  func.func @transform_5(%arg0: i32) -> (i32, i32) {
    %c0_i32 = arith.constant 0 : i32
    %c0_i32_0 = arith.constant 0 : i32
    return %c0_i32, %arg0 : i32, i32
  }
  func.func @transform_6(%arg0: i32) -> (i32, i32) {
    %c0_i32 = arith.constant 0 : i32
    %c0_i32_0 = arith.constant 0 : i32
    return %c0_i32, %arg0 : i32, i32
  }
  func.func @transform_7(%arg0: i32) -> (i32, i32) {
    %c0_i32 = arith.constant 0 : i32
    %c0_i32_0 = arith.constant 0 : i32
    return %c0_i32, %arg0 : i32, i32
  }
  func.func @transform_8(%arg0: i32) -> (i32, i32) {
    %c0_i32 = arith.constant 0 : i32
    %c0_i32_0 = arith.constant 0 : i32
    return %arg0, %c0_i32 : i32, i32
  }
}

module attributes {stable_mosaic.version = 11 : i64} {
  func.func @_pml_tile_kernel(%arg0: i32, %arg1: i32, %arg2: memref<16x32xbf16, #tpu.memory_space<vmem>>, %arg3: memref<16x32xbf16, #tpu.memory_space<vmem>>, %arg4: memref<16x1xf32, #tpu.memory_space<vmem>>, %arg5: memref<1x16xf32, #tpu.memory_space<vmem>>, %arg6: memref<1x128xf32, #tpu.memory_space<vmem>>, %arg7: memref<16x1xf32, #tpu.memory_space<vmem>>, %arg8: memref<16x1xf32, #tpu.memory_space<vmem>>, %arg9: memref<16x1xf32, #tpu.memory_space<vmem>>, %arg10: memref<16x1xf32, #tpu.memory_space<vmem>>) attributes {dimension_semantics = [#tpu.dimension_semantics<parallel>, #tpu.dimension_semantics<arbitrary>], iteration_bounds = array<i64: 1, 1>, scalar_prefetch = 0 : i64, scratch_operands = 4 : i64, tpu.core_type = #tpu.core_type<tc>, window_params = [{transform_indices = @transform_0, window_bounds = array<i64: 16, 32>}, {transform_indices = @transform_1, window_bounds = array<i64: 16, 32>}, {transform_indices = @transform_2, window_bounds = array<i64: 16, 1>}, {transform_indices = @transform_3, window_bounds = array<i64: 1, 16>}, {transform_indices = @transform_4, window_bounds = array<i64: 1, 128>}]} {
    %c0_i32 = arith.constant 0 : i32
    %0 = arith.cmpi eq, %arg1, %c0_i32 : i32
    %1 = arith.extui %0 : i1 to i32
    %c0_i32_0 = arith.constant 0 : i32
    %2 = arith.cmpi ne, %1, %c0_i32_0 : i32
    scf.if %2 {
      %cst_53 = arith.constant -1.000000e+30 : f32
      %109 = vector.broadcast %cst_53 : f32 to vector<16x1xf32>
      %c0_54 = arith.constant 0 : index
      %c0_55 = arith.constant 0 : index
      %110 = vector.load %arg7[%c0_54, %c0_55] : memref<16x1xf32, #tpu.memory_space<vmem>>, vector<16x1xf32>
      tpu.vector_store %arg7[%c0_54, %c0_55], %109 {strides = array<i32>} : memref<16x1xf32, #tpu.memory_space<vmem>>, vector<16x1xf32>,
      %cst_56 = arith.constant 0.000000e+00 : f32
      %111 = vector.broadcast %cst_56 : f32 to vector<16x1xf32>
      %c0_57 = arith.constant 0 : index
      %c0_58 = arith.constant 0 : index
      %112 = vector.load %arg8[%c0_57, %c0_58] : memref<16x1xf32, #tpu.memory_space<vmem>>, vector<16x1xf32>
      tpu.vector_store %arg8[%c0_57, %c0_58], %111 {strides = array<i32>} : memref<16x1xf32, #tpu.memory_space<vmem>>, vector<16x1xf32>,
      %cst_59 = arith.constant -1.000000e+30 : f32
      %113 = vector.broadcast %cst_59 : f32 to vector<16x1xf32>
      %c0_60 = arith.constant 0 : index
      %c0_61 = arith.constant 0 : index
      %114 = vector.load %arg9[%c0_60, %c0_61] : memref<16x1xf32, #tpu.memory_space<vmem>>, vector<16x1xf32>
      tpu.vector_store %arg9[%c0_60, %c0_61], %113 {strides = array<i32>} : memref<16x1xf32, #tpu.memory_space<vmem>>, vector<16x1xf32>,
      %cst_62 = arith.constant 0.000000e+00 : f32
      %115 = vector.broadcast %cst_62 : f32 to vector<16x1xf32>
      %c0_63 = arith.constant 0 : index
      %c0_64 = arith.constant 0 : index
      %116 = vector.load %arg10[%c0_63, %c0_64] : memref<16x1xf32, #tpu.memory_space<vmem>>, vector<16x1xf32>
      tpu.vector_store %arg10[%c0_63, %c0_64], %115 {strides = array<i32>} : memref<16x1xf32, #tpu.memory_space<vmem>>, vector<16x1xf32>,
    } else {
    }
    %c0 = arith.constant 0 : index
    %c0_1 = arith.constant 0 : index
    %3 = vector.load %arg2[%c0, %c0_1] : memref<16x32xbf16, #tpu.memory_space<vmem>>, vector<16x32xbf16>
    %c0_2 = arith.constant 0 : index
    %c0_3 = arith.constant 0 : index
    %4 = vector.load %arg3[%c0_2, %c0_3] : memref<16x32xbf16, #tpu.memory_space<vmem>>, vector<16x32xbf16>
    %cst = arith.constant dense<0.000000e+00> : vector<16x16xf32>
    %5 = tpu.matmul %3, %4, %cst {dimension_numbers = #tpu.dot_dimension_numbers<[1], [1], [0], [0], [0, 0, 1, 0], [], []>} : vector<16x32xbf16>, vector<16x32xbf16>, vector<16x16xf32> -> vector<16x16xf32>
    %cst_4 = arith.constant 2.000000e+00 : f32
    %6 = vector.broadcast %cst_4 : f32 to vector<16x16xf32>
    %7 = arith.mulf %6, %5 : vector<16x16xf32>
    %cst_5 = arith.constant 2.000000e+00 : f32
    %8 = vector.broadcast %cst_5 : f32 to vector<16x16xf32>
    %9 = arith.subf %8, %7 : vector<16x16xf32>
    %cst_6 = arith.constant 0.000000e+00 : f32
    %10 = vector.broadcast %cst_6 : f32 to vector<16x16xf32>
    %11 = arith.cmpf ole, %9, %10 : vector<16x16xf32>
    %cst_7 = arith.constant 1.000000e-16 : f32
    %12 = vector.broadcast %cst_7 : f32 to vector<16x16xf32>
    %13 = arith.maximumf %9, %12 : vector<16x16xf32>
    %14 = math.sqrt %13 : vector<16x16xf32>
    %cst_8 = arith.constant 0.000000e+00 : f32
    %15 = vector.broadcast %cst_8 : f32 to vector<16x16xf32>
    %16 = arith.select %11, %15, %14 : vector<16x16xi1>, vector<16x16xf32>
    %c0_9 = arith.constant 0 : index
    %c0_10 = arith.constant 0 : index
    %17 = vector.load %arg4[%c0_9, %c0_10] : memref<16x1xf32, #tpu.memory_space<vmem>>, vector<16x1xf32>
    %c0_11 = arith.constant 0 : index
    %c0_12 = arith.constant 0 : index
    %18 = vector.load %arg5[%c0_11, %c0_12] : memref<1x16xf32, #tpu.memory_space<vmem>>, vector<1x16xf32>
    %19 = vector.broadcast %17 : vector<16x1xf32> to vector<16x16xf32>
    %20 = vector.broadcast %18 : vector<1x16xf32> to vector<16x16xf32>
    %21 = arith.cmpf oeq, %19, %20 : vector<16x16xf32>
    %cst_13 = arith.constant 0.000000e+00 : f32
    %22 = vector.broadcast %cst_13 : f32 to vector<16x1xf32>
    %23 = arith.cmpf oge, %17, %22 : vector<16x1xf32>
    %cst_14 = arith.constant 0.000000e+00 : f32
    %24 = vector.broadcast %cst_14 : f32 to vector<1x16xf32>
    %25 = arith.cmpf oge, %18, %24 : vector<1x16xf32>
    %26 = vector.broadcast %23 : vector<16x1xi1> to vector<16x16xi1>
    %27 = vector.broadcast %25 : vector<1x16xi1> to vector<16x16xi1>
    %28 = arith.andi %26, %27 : vector<16x16xi1>
    %29 = tpu.iota {dimensions = array<i32: 0>} : vector<16x16xi32>
    %c16_i32 = arith.constant 16 : i32
    %30 = arith.muli %arg0, %c16_i32 : i32
    %31 = vector.broadcast %30 : i32 to vector<16x16xi32>
    %32 = arith.addi %29, %31 : vector<16x16xi32>
    %33 = tpu.iota {dimensions = array<i32: 1>} : vector<16x16xi32>
    %c16_i32_15 = arith.constant 16 : i32
    %34 = arith.muli %arg1, %c16_i32_15 : i32
    %35 = vector.broadcast %34 : i32 to vector<16x16xi32>
    %36 = arith.addi %33, %35 : vector<16x16xi32>
    %37 = arith.cmpi ne, %32, %36 : vector<16x16xi32>
    %38 = arith.andi %21, %37 : vector<16x16xi1>
    %cst_16 = arith.constant 0.699999988 : f32
    %39 = vector.broadcast %cst_16 : f32 to vector<16x16xf32>
    %40 = arith.cmpf ogt, %16, %39 : vector<16x16xf32>
    %41 = arith.andi %38, %40 : vector<16x16xi1>
    %42 = arith.andi %41, %28 : vector<16x16xi1>
    %43 = arith.extui %42 : vector<16x16xi1> to vector<16x16xi32>
    %44 = arith.sitofp %43 : vector<16x16xi32> to vector<16x16xf32>
    %cst_17 = arith.constant dense<true> : vector<16x16xi1>
    %45 = arith.xori %21, %cst_17 : vector<16x16xi1>
    %cst_18 = arith.constant 1.400000e+00 : f32
    %46 = vector.broadcast %cst_18 : f32 to vector<16x16xf32>
    %47 = arith.cmpf olt, %16, %46 : vector<16x16xf32>
    %48 = arith.andi %45, %47 : vector<16x16xi1>
    %49 = arith.andi %48, %28 : vector<16x16xi1>
    %50 = arith.extui %49 : vector<16x16xi1> to vector<16x16xi32>
    %51 = arith.sitofp %50 : vector<16x16xi32> to vector<16x16xf32>
    %cst_19 = arith.constant 0.699999988 : f32
    %52 = vector.broadcast %cst_19 : f32 to vector<16x16xf32>
    %53 = arith.subf %16, %52 : vector<16x16xf32>
    %54 = arith.mulf %53, %53 : vector<16x16xf32>
    %cst_20 = arith.constant 5.000000e+01 : f32
    %55 = vector.broadcast %cst_20 : f32 to vector<16x16xf32>
    %56 = arith.mulf %54, %55 : vector<16x16xf32>
    %cst_21 = arith.constant 1.400000e+00 : f32
    %57 = vector.broadcast %cst_21 : f32 to vector<16x16xf32>
    %58 = arith.subf %57, %16 : vector<16x16xf32>
    %59 = arith.mulf %58, %58 : vector<16x16xf32>
    %cst_22 = arith.constant 5.000000e+01 : f32
    %60 = vector.broadcast %cst_22 : f32 to vector<16x16xf32>
    %61 = arith.mulf %59, %60 : vector<16x16xf32>
    %cst_23 = arith.constant 0.000000e+00 : f32
    %62 = vector.broadcast %cst_23 : f32 to vector<16x16xf32>
    %63 = arith.cmpf ogt, %44, %62 : vector<16x16xf32>
    %cst_24 = arith.constant -1.000000e+30 : f32
    %64 = vector.broadcast %cst_24 : f32 to vector<16x16xf32>
    %65 = arith.select %63, %56, %64 : vector<16x16xi1>, vector<16x16xf32>
    %c0_25 = arith.constant 0 : index
    %c0_26 = arith.constant 0 : index
    %66 = vector.load %arg7[%c0_25, %c0_26] : memref<16x1xf32, #tpu.memory_space<vmem>>, vector<16x1xf32>
    %cst_27 = arith.constant dense<0xFF800000> : vector<16xf32>
    %67 = vector.multi_reduction <maximumf>, %65, %cst_27 [1] : vector<16x16xf32> to vector<16xf32>
    %68 = vector.shape_cast %67 : vector<16xf32> to vector<16x1xf32>
    %69 = arith.maximumf %66, %68 : vector<16x1xf32>
    %70 = vector.broadcast %69 : vector<16x1xf32> to vector<16x16xf32>
    %71 = arith.subf %65, %70 : vector<16x16xf32>
    %72 = math.exp %71 : vector<16x16xf32>
    %73 = arith.mulf %72, %44 : vector<16x16xf32>
    %c0_28 = arith.constant 0 : index
    %c0_29 = arith.constant 0 : index
    %74 = vector.load %arg8[%c0_28, %c0_29] : memref<16x1xf32, #tpu.memory_space<vmem>>, vector<16x1xf32>
    %c0_30 = arith.constant 0 : index
    %c0_31 = arith.constant 0 : index
    %75 = vector.load %arg7[%c0_30, %c0_31] : memref<16x1xf32, #tpu.memory_space<vmem>>, vector<16x1xf32>
    %76 = arith.subf %75, %69 : vector<16x1xf32>
    %77 = math.exp %76 : vector<16x1xf32>
    %78 = arith.mulf %74, %77 : vector<16x1xf32>
    %cst_32 = arith.constant dense<0.000000e+00> : vector<16xf32>
    %79 = vector.multi_reduction <add>, %73, %cst_32 [1] : vector<16x16xf32> to vector<16xf32>
    %80 = vector.shape_cast %79 : vector<16xf32> to vector<16x1xf32>
    %81 = arith.addf %78, %80 : vector<16x1xf32>
    %c0_33 = arith.constant 0 : index
    %c0_34 = arith.constant 0 : index
    %82 = vector.load %arg8[%c0_33, %c0_34] : memref<16x1xf32, #tpu.memory_space<vmem>>, vector<16x1xf32>
    tpu.vector_store %arg8[%c0_33, %c0_34], %81 {strides = array<i32>} : memref<16x1xf32, #tpu.memory_space<vmem>>, vector<16x1xf32>,
    %c0_35 = arith.constant 0 : index
    %c0_36 = arith.constant 0 : index
    %83 = vector.load %arg7[%c0_35, %c0_36] : memref<16x1xf32, #tpu.memory_space<vmem>>, vector<16x1xf32>
    tpu.vector_store %arg7[%c0_35, %c0_36], %69 {strides = array<i32>} : memref<16x1xf32, #tpu.memory_space<vmem>>, vector<16x1xf32>,
    %cst_37 = arith.constant 0.000000e+00 : f32
    %84 = vector.broadcast %cst_37 : f32 to vector<16x16xf32>
    %85 = arith.cmpf ogt, %51, %84 : vector<16x16xf32>
    %cst_38 = arith.constant -1.000000e+30 : f32
    %86 = vector.broadcast %cst_38 : f32 to vector<16x16xf32>
    %87 = arith.select %85, %61, %86 : vector<16x16xi1>, vector<16x16xf32>
    %c0_39 = arith.constant 0 : index
    %c0_40 = arith.constant 0 : index
    %88 = vector.load %arg9[%c0_39, %c0_40] : memref<16x1xf32, #tpu.memory_space<vmem>>, vector<16x1xf32>
    %cst_41 = arith.constant dense<0xFF800000> : vector<16xf32>
    %89 = vector.multi_reduction <maximumf>, %87, %cst_41 [1] : vector<16x16xf32> to vector<16xf32>
    %90 = vector.shape_cast %89 : vector<16xf32> to vector<16x1xf32>
    %91 = arith.maximumf %88, %90 : vector<16x1xf32>
    %92 = vector.broadcast %91 : vector<16x1xf32> to vector<16x16xf32>
    %93 = arith.subf %87, %92 : vector<16x16xf32>
    %94 = math.exp %93 : vector<16x16xf32>
    %95 = arith.mulf %94, %51 : vector<16x16xf32>
    %c0_42 = arith.constant 0 : index
    %c0_43 = arith.constant 0 : index
    %96 = vector.load %arg10[%c0_42, %c0_43] : memref<16x1xf32, #tpu.memory_space<vmem>>, vector<16x1xf32>
    %c0_44 = arith.constant 0 : index
    %c0_45 = arith.constant 0 : index
    %97 = vector.load %arg9[%c0_44, %c0_45] : memref<16x1xf32, #tpu.memory_space<vmem>>, vector<16x1xf32>
    %98 = arith.subf %97, %91 : vector<16x1xf32>
    %99 = math.exp %98 : vector<16x1xf32>
    %100 = arith.mulf %96, %99 : vector<16x1xf32>
    %cst_46 = arith.constant dense<0.000000e+00> : vector<16xf32>
    %101 = vector.multi_reduction <add>, %95, %cst_46 [1] : vector<16x16xf32> to vector<16xf32>
    %102 = vector.shape_cast %101 : vector<16xf32> to vector<16x1xf32>
    %103 = arith.addf %100, %102 : vector<16x1xf32>
    %c0_47 = arith.constant 0 : index
    %c0_48 = arith.constant 0 : index
    %104 = vector.load %arg10[%c0_47, %c0_48] : memref<16x1xf32, #tpu.memory_space<vmem>>, vector<16x1xf32>
    tpu.vector_store %arg10[%c0_47, %c0_48], %103 {strides = array<i32>} : memref<16x1xf32, #tpu.memory_space<vmem>>, vector<16x1xf32>,
    %c0_49 = arith.constant 0 : index
    %c0_50 = arith.constant 0 : index
    %105 = vector.load %arg9[%c0_49, %c0_50] : memref<16x1xf32, #tpu.memory_space<vmem>>, vector<16x1xf32>
    tpu.vector_store %arg9[%c0_49, %c0_50], %91 {strides = array<i32>} : memref<16x1xf32, #tpu.memory_space<vmem>>, vector<16x1xf32>,
    %c0_i32_51 = arith.constant 0 : i32
    %106 = arith.cmpi eq, %arg1, %c0_i32_51 : i32
    %107 = arith.extui %106 : i1 to i32
    %c0_i32_52 = arith.constant 0 : i32
    %108 = arith.cmpi ne, %107, %c0_i32_52 : i32
    scf.if %108 {
      %c0_53 = arith.constant 0 : index
      %c0_54 = arith.constant 0 : index
      %109 = vector.load %arg8[%c0_53, %c0_54] : memref<16x1xf32, #tpu.memory_space<vmem>>, vector<16x1xf32>
      %cst_55 = arith.constant 0.000000e+00 : f32
      %110 = vector.broadcast %cst_55 : f32 to vector<16x1xf32>
      %111 = arith.cmpf ogt, %109, %110 : vector<16x1xf32>
      %c0_56 = arith.constant 0 : index
      %c0_57 = arith.constant 0 : index
      %112 = vector.load %arg7[%c0_56, %c0_57] : memref<16x1xf32, #tpu.memory_space<vmem>>, vector<16x1xf32>
      %cst_58 = arith.constant 1.000000e-30 : f32
      %113 = vector.broadcast %cst_58 : f32 to vector<16x1xf32>
      %114 = arith.maximumf %109, %113 : vector<16x1xf32>
      %115 = math.log %114 : vector<16x1xf32>
      %116 = arith.addf %112, %115 : vector<16x1xf32>
      %cst_59 = arith.constant 0.000000e+00 : f32
      %117 = vector.broadcast %cst_59 : f32 to vector<16x1xf32>
      %118 = arith.select %111, %116, %117 : vector<16x1xi1>, vector<16x1xf32>
      %119 = vector.shape_cast %118 : vector<16x1xf32> to vector<1x16x1xf32>
      %cst_60 = arith.constant dense<0.000000e+00> : vector<1xf32>
      %120 = vector.multi_reduction <add>, %119, %cst_60 [1, 2] : vector<1x16x1xf32> to vector<1xf32>
      %121 = vector.shape_cast %120 : vector<1xf32> to vector<1x1x1xf32>
      %122 = vector.extract %121[0, 0, 0] : f32 from vector<1x1x1xf32>
      %123 = arith.extui %111 : vector<16x1xi1> to vector<16x1xi32>
      %124 = arith.sitofp %123 : vector<16x1xi32> to vector<16x1xf32>
      %125 = vector.shape_cast %124 : vector<16x1xf32> to vector<1x16x1xf32>
      %cst_61 = arith.constant dense<0.000000e+00> : vector<1xf32>
      %126 = vector.multi_reduction <add>, %125, %cst_61 [1, 2] : vector<1x16x1xf32> to vector<1xf32>
      %127 = vector.shape_cast %126 : vector<1xf32> to vector<1x1x1xf32>
      %128 = vector.extract %127[0, 0, 0] : f32 from vector<1x1x1xf32>
      %c0_62 = arith.constant 0 : index
      %c0_63 = arith.constant 0 : index
      %129 = vector.load %arg10[%c0_62, %c0_63] : memref<16x1xf32, #tpu.memory_space<vmem>>, vector<16x1xf32>
      %cst_64 = arith.constant 0.000000e+00 : f32
      %130 = vector.broadcast %cst_64 : f32 to vector<16x1xf32>
      %131 = arith.cmpf ogt, %129, %130 : vector<16x1xf32>
      %c0_65 = arith.constant 0 : index
      %c0_66 = arith.constant 0 : index
      %132 = vector.load %arg9[%c0_65, %c0_66] : memref<16x1xf32, #tpu.memory_space<vmem>>, vector<16x1xf32>
      %cst_67 = arith.constant 1.000000e-30 : f32
      %133 = vector.broadcast %cst_67 : f32 to vector<16x1xf32>
      %134 = arith.maximumf %129, %133 : vector<16x1xf32>
      %135 = math.log %134 : vector<16x1xf32>
      %136 = arith.addf %132, %135 : vector<16x1xf32>
      %cst_68 = arith.constant 0.000000e+00 : f32
      %137 = vector.broadcast %cst_68 : f32 to vector<16x1xf32>
      %138 = arith.select %131, %136, %137 : vector<16x1xi1>, vector<16x1xf32>
      %139 = vector.shape_cast %138 : vector<16x1xf32> to vector<1x16x1xf32>
      %cst_69 = arith.constant dense<0.000000e+00> : vector<1xf32>
      %140 = vector.multi_reduction <add>, %139, %cst_69 [1, 2] : vector<1x16x1xf32> to vector<1xf32>
      %141 = vector.shape_cast %140 : vector<1xf32> to vector<1x1x1xf32>
      %142 = vector.extract %141[0, 0, 0] : f32 from vector<1x1x1xf32>
      %143 = arith.extui %131 : vector<16x1xi1> to vector<16x1xi32>
      %144 = arith.sitofp %143 : vector<16x1xi32> to vector<16x1xf32>
      %145 = vector.shape_cast %144 : vector<16x1xf32> to vector<1x16x1xf32>
      %cst_70 = arith.constant dense<0.000000e+00> : vector<1xf32>
      %146 = vector.multi_reduction <add>, %145, %cst_70 [1, 2] : vector<1x16x1xf32> to vector<1xf32>
      %147 = vector.shape_cast %146 : vector<1xf32> to vector<1x1x1xf32>
      %148 = vector.extract %147[0, 0, 0] : f32 from vector<1x1x1xf32>
      %149 = tpu.iota {dimensions = array<i32: 1>} : vector<1x128xi32>
      %c0_i32_71 = arith.constant 0 : i32
      %150 = vector.broadcast %c0_i32_71 : i32 to vector<1x128xi32>
      %151 = arith.cmpi eq, %149, %150 : vector<1x128xi32>
      %cst_72 = arith.constant 0.000000e+00 : f32
      %152 = vector.broadcast %122 : f32 to vector<1x128xf32>
      %153 = vector.broadcast %cst_72 : f32 to vector<1x128xf32>
      %154 = arith.select %151, %152, %153 : vector<1x128xi1>, vector<1x128xf32>
      %c1_i32 = arith.constant 1 : i32
      %155 = vector.broadcast %c1_i32 : i32 to vector<1x128xi32>
      %156 = arith.cmpi eq, %149, %155 : vector<1x128xi32>
      %cst_73 = arith.constant 0.000000e+00 : f32
      %157 = vector.broadcast %128 : f32 to vector<1x128xf32>
      %158 = vector.broadcast %cst_73 : f32 to vector<1x128xf32>
      %159 = arith.select %156, %157, %158 : vector<1x128xi1>, vector<1x128xf32>
      %160 = arith.addf %154, %159 : vector<1x128xf32>
      %c2_i32 = arith.constant 2 : i32
      %161 = vector.broadcast %c2_i32 : i32 to vector<1x128xi32>
      %162 = arith.cmpi eq, %149, %161 : vector<1x128xi32>
      %cst_74 = arith.constant 0.000000e+00 : f32
      %163 = vector.broadcast %142 : f32 to vector<1x128xf32>
      %164 = vector.broadcast %cst_74 : f32 to vector<1x128xf32>
      %165 = arith.select %162, %163, %164 : vector<1x128xi1>, vector<1x128xf32>
      %166 = arith.addf %160, %165 : vector<1x128xf32>
      %c3_i32 = arith.constant 3 : i32
      %167 = vector.broadcast %c3_i32 : i32 to vector<1x128xi32>
      %168 = arith.cmpi eq, %149, %167 : vector<1x128xi32>
      %cst_75 = arith.constant 0.000000e+00 : f32
      %169 = vector.broadcast %148 : f32 to vector<1x128xf32>
      %170 = vector.broadcast %cst_75 : f32 to vector<1x128xf32>
      %171 = arith.select %168, %169, %170 : vector<1x128xi1>, vector<1x128xf32>
      %172 = arith.addf %166, %171 : vector<1x128xf32>
      %c0_76 = arith.constant 0 : index
      %c0_77 = arith.constant 0 : index
      %173 = vector.load %arg6[%c0_76, %c0_77] : memref<1x128xf32, #tpu.memory_space<vmem>>, vector<1x128xf32>
      tpu.vector_store %arg6[%c0_76, %c0_77], %172 {strides = array<i32>} : memref<1x128xf32, #tpu.memory_space<vmem>>, vector<1x128xf32>,
    } else {
    }
    return
  }
  func.func @transform_0(%arg0: i32, %arg1: i32) -> (i32, i32) {
    %c0_i32 = arith.constant 0 : i32
    %c0_i32_0 = arith.constant 0 : i32
    return %arg0, %c0_i32 : i32, i32
  }
  func.func @transform_1(%arg0: i32, %arg1: i32) -> (i32, i32) {
    %c0_i32 = arith.constant 0 : i32
    %c0_i32_0 = arith.constant 0 : i32
    return %arg1, %c0_i32 : i32, i32
  }
  func.func @transform_2(%arg0: i32, %arg1: i32) -> (i32, i32) {
    %c0_i32 = arith.constant 0 : i32
    %c0_i32_0 = arith.constant 0 : i32
    return %arg0, %c0_i32 : i32, i32
  }
  func.func @transform_3(%arg0: i32, %arg1: i32) -> (i32, i32) {
    %c0_i32 = arith.constant 0 : i32
    %c0_i32_0 = arith.constant 0 : i32
    return %c0_i32, %arg1 : i32, i32
  }
  func.func @transform_4(%arg0: i32, %arg1: i32) -> (i32, i32) {
    %c0_i32 = arith.constant 0 : i32
    %c0_i32_0 = arith.constant 0 : i32
    return %arg0, %c0_i32 : i32, i32
  }
}

module attributes {stable_mosaic.version = 11 : i64} {
  func.func @_proj_norm_kernel(%arg0: i32, %arg1: memref<16x32xbf16, #tpu.memory_space<vmem>>, %arg2: memref<32x32xbf16, #tpu.memory_space<vmem>>, %arg3: memref<1x32xf32, #tpu.memory_space<vmem>>, %arg4: memref<16x32xbf16, #tpu.memory_space<vmem>>) attributes {dimension_semantics = [#tpu.dimension_semantics<parallel>], iteration_bounds = array<i64: 1>, scalar_prefetch = 0 : i64, scratch_operands = 0 : i64, tpu.core_type = #tpu.core_type<tc>, window_params = [{transform_indices = @transform_0, window_bounds = array<i64: 16, 32>}, {pipeline_mode = #tpu.pipeline_mode<synchronous>, transform_indices = @transform_1, window_bounds = array<i64: 32, 32>}, {pipeline_mode = #tpu.pipeline_mode<synchronous>, transform_indices = @transform_2, window_bounds = array<i64: 1, 32>}, {transform_indices = @transform_3, window_bounds = array<i64: 16, 32>}]} {
    %c0 = arith.constant 0 : index
    %c0_0 = arith.constant 0 : index
    %0 = vector.load %arg1[%c0, %c0_0] : memref<16x32xbf16, #tpu.memory_space<vmem>>, vector<16x32xbf16>
    %c0_1 = arith.constant 0 : index
    %c0_2 = arith.constant 0 : index
    %1 = vector.load %arg2[%c0_1, %c0_2] : memref<32x32xbf16, #tpu.memory_space<vmem>>, vector<32x32xbf16>
    %cst = arith.constant dense<0.000000e+00> : vector<16x32xf32>
    %2 = tpu.matmul %0, %1, %cst {dimension_numbers = #tpu.dot_dimension_numbers<[1], [0], [0], [1], [0, 0, 1, 1], [], []>} : vector<16x32xbf16>, vector<32x32xbf16>, vector<16x32xf32> -> vector<16x32xf32>
    %c0_3 = arith.constant 0 : index
    %c0_4 = arith.constant 0 : index
    %3 = vector.load %arg3[%c0_3, %c0_4] : memref<1x32xf32, #tpu.memory_space<vmem>>, vector<1x32xf32>
    %4 = vector.broadcast %3 : vector<1x32xf32> to vector<16x32xf32>
    %5 = arith.addf %2, %4 : vector<16x32xf32>
    %6 = arith.mulf %5, %5 : vector<16x32xf32>
    %cst_5 = arith.constant dense<0.000000e+00> : vector<16xf32>
    %7 = vector.multi_reduction <add>, %6, %cst_5 [1] : vector<16x32xf32> to vector<16xf32>
    %8 = vector.shape_cast %7 : vector<16xf32> to vector<16x1xf32>
    %cst_6 = arith.constant 1.000000e-24 : f32
    %9 = vector.broadcast %cst_6 : f32 to vector<16x1xf32>
    %10 = arith.maximumf %8, %9 : vector<16x1xf32>
    %11 = math.rsqrt %10 : vector<16x1xf32>
    %12 = vector.broadcast %11 : vector<16x1xf32> to vector<16x32xf32>
    %13 = arith.mulf %5, %12 : vector<16x32xf32>
    %14 = arith.truncf %13 : vector<16x32xf32> to vector<16x32xbf16>
    %c0_7 = arith.constant 0 : index
    %c0_8 = arith.constant 0 : index
    %15 = vector.load %arg4[%c0_7, %c0_8] : memref<16x32xbf16, #tpu.memory_space<vmem>>, vector<16x32xbf16>
    tpu.vector_store %arg4[%c0_7, %c0_8], %14 {strides = array<i32>} : memref<16x32xbf16, #tpu.memory_space<vmem>>, vector<16x32xbf16>,
    return
  }
  func.func @transform_0(%arg0: i32) -> (i32, i32) {
    %c0_i32 = arith.constant 0 : i32
    %c0_i32_0 = arith.constant 0 : i32
    return %arg0, %c0_i32 : i32, i32
  }
  func.func @transform_1(%arg0: i32) -> (i32, i32) {
    %c0_i32 = arith.constant 0 : i32
    %c0_i32_0 = arith.constant 0 : i32
    %c0_i32_1 = arith.constant 0 : i32
    return %c0_i32, %c0_i32_0 : i32, i32
  }
  func.func @transform_2(%arg0: i32) -> (i32, i32) {
    %c0_i32 = arith.constant 0 : i32
    %c0_i32_0 = arith.constant 0 : i32
    %c0_i32_1 = arith.constant 0 : i32
    return %c0_i32, %c0_i32_0 : i32, i32
  }
  func.func @transform_3(%arg0: i32) -> (i32, i32) {
    %c0_i32 = arith.constant 0 : i32
    %c0_i32_0 = arith.constant 0 : i32
    return %arg0, %c0_i32 : i32, i32
  }
}

</mosaic_0001>

<llo_original>
// kernel: adaptive_classifier_forward.4
$region0: #{adaptive_classifier_forward.4}
  #allocation0 [shape = 'u32[]', space=smem, size = 0x4, offset = 0x4, fixed_abs, tag = 'smem constant byte address 0x4 - core index']
  #allocation1 [shape = 'u32[72,128]{1,0:T(1,128)}', space=vmem, size = 0x9000, scoped, tag = 'internal scratch']
  %s0 = inlined_call_operand.vmem [shape: bf16[16,32], index: 0, kind: input, shape index: {}]
  %s1 = inlined_call_operand.vmem [shape: bf16[32,32], index: 1, kind: input, shape index: {}]
  %s2 = inlined_call_operand.vmem [shape: f32[1,32], index: 2, kind: input, shape index: {}]
  %s3 = inlined_call_operand.vmem [shape: bf16[16,32], index: 3, kind: output, shape index: {}]
  %s4 = sld [smem:[#allocation0]]
  $region22: #{adaptive_classifier_forward.4} parent=0
    _
  %s6 = ssub.s32 1, %s4
  %s7 = scalar_select 0, %s6, %s4
  // Predicated region
  $region2: #{adaptive_classifier_forward.4} parent=0 // pred_check
    _
  $region3: #{adaptive_classifier_forward.4} parent=0 // pred_check_branch
    %9 = sbr.rel (0) target = $region5
  $region4: #{adaptive_classifier_forward.4} parent=0 // pred_region
    _
  $region5: #{adaptive_classifier_forward.4} parent=0 // pred_fallthru
    _
  // Predicated region
  $region6: #{adaptive_classifier_forward.4} parent=0 // pred_check
    _
  $region7: #{adaptive_classifier_forward.4} parent=0 // pred_check_branch
    %11 = sbr.rel (0) target = $region9
  $region8: #{adaptive_classifier_forward.4} parent=0 // pred_region
    _
  $region9: #{adaptive_classifier_forward.4} parent=0 // pred_fallthru
    _
  // Predicated region
  $region10: #{adaptive_classifier_forward.4} parent=0 // pred_check
    _
  $region11: #{adaptive_classifier_forward.4} parent=0 // pred_check_branch
    %13 = sbr.rel (0) target = $region13
  $region12: #{adaptive_classifier_forward.4} parent=0 // pred_region
    _
  $region13: #{adaptive_classifier_forward.4} parent=0 // pred_fallthru
    _
  %v15 = vld [vmem:[%s0] sm:$0xf]
  %v16 = vld [vmem:[%s0 + $0x4] sm:$0xf]
  %v17 = vld [vmem:[%s1] sm:$0xf]
  %v18 = vld [vmem:[%s1 + $0x4] sm:$0xf]
  %v19 = vld [vmem:[%s1 + $0x8] sm:$0xf]
  %v20 = vld [vmem:[%s1 + $0xc] sm:$0xf]
  %v21 = vld [vmem:[%s2] sm:$0x1]
  %v23 = vperm.slane %v21, 0
  %v27 = vunpack.c.l.b16 %v15
  %v28 = vunpack.c.l.b16 %v16
  %v29 = vpack.c.b16 %v28, %v27
  %v34 = vunpack.c.l.b16 %v17
  %v35 = vunpack.c.l.b16 %v18
  %v36 = vunpack.c.l.b16 %v19
  %v37 = vunpack.c.l.b16 %v20
  %v38 = vpack.c.b16 %v35, %v34
  %v39 = vpack.c.b16 %v37, %v36
  %vm42 = vcmask 261120
  %v44 = vsel %vm42, %v29, 0
  %46 = vmatpush.bf16.msra.mxu0 0
  %47 = vmatpush.bf16.msra.mxu0 0
  %48 = vmatpush.bf16.msra.mxu0 0
  %49 = vmatpush.bf16.msra.mxu0 0
  %50 = vmatpush.bf16.msra.mxu0 0
  %51 = vmatpush.bf16.msra.mxu0 0
  %52 = vmatpush.bf16.msra.mxu0 %v39
  %53 = vmatpush.bf16.msra.mxu0 %v38
  %54 = vmatmul.bf16.gmra.mxu0 %v44
  %v55 = vpop.f32.mrf.mxu0
  %v56 = vadd.f32 %v23, %v55
  %v57 = vpop.f32.mrf.mxu0
  %v58 = vadd.f32 %v23, %v57
  %59 = vdwg.mxu0
  %v60 = vmul.f32 %v56, %v56
  %v61 = vmul.f32 %v58, %v58
  %v62 = vsel %vm42, %v60, 0.0
  %63 = vadd.xlane.f32.xlu0 %v62
  %v64 = vpop.xlane.xlu0 %63
  %v65 = vsel %vm42, %v61, 0.0
  %66 = vadd.xlane.f32.xlu0 %v65
  %v67 = vpop.xlane.xlu0 %66
  %v68 = vmax.f32 %v64, 1e-24
  %v69 = vmax.f32 %v67, 1e-24
  %v70 = vrsqrt.pop %v68
  %v71 = vmul.f32 %v70, %v68
  %v72 = vmul.f32 %v71, %v70
  %v73 = vmul.f32 0.5, %v72
  %v74 = vsub.f32 1.5, %v73
  %v75 = vmul.f32 %v70, %v74
  %vm76 = vweird.f32 %v68
  %vm77 = vweird.f32 %v70
  %vm78 = vmor %vm76, %vm77
  %v79 = vsel %vm78, %v70, %v75
  %v80 = vrsqrt.pop %v69
  %v81 = vmul.f32 %v80, %v69
  %v82 = vmul.f32 %v81, %v80
  %v83 = vmul.f32 0.5, %v82
  %v84 = vsub.f32 1.5, %v83
  %v85 = vmul.f32 %v80, %v84
  %vm86 = vweird.f32 %v69
  %vm87 = vweird.f32 %v80
  %vm88 = vmor %vm86, %vm87
  %v89 = vsel %vm88, %v80, %v85
  %v90 = vmul.f32 %v56, %v79
  %v91 = vmul.f32 %v58, %v89
  %v92 = vpack.c.bf16 %v90, %v90
  %v93 = vpack.c.bf16 %v91, %v91
  %vm94 = vcmask 257024
  %95 = vst.msk [vmem:[%s3] sm:$0xf] %vm94, %v92
  %96 = vst.msk [vmem:[%s3 + $0x4] sm:$0xf] %vm94, %v93
  // Predicated region
  $region14: #{adaptive_classifier_forward.4} parent=0 // pred_check
    _
  $region15: #{adaptive_classifier_forward.4} parent=0 // pred_check_branch
    %98 = sbr.rel (0) target = $region17
  $region16: #{adaptive_classifier_forward.4} parent=0 // pred_region
    _
  $region17: #{adaptive_classifier_forward.4} parent=0 // pred_fallthru
    _
  // Predicated region
  $region18: #{adaptive_classifier_forward.4} parent=0 // pred_check
    _
  $region19: #{adaptive_classifier_forward.4} parent=0 // pred_check_branch
    %100 = sbr.rel (0) target = $region21
  $region20: #{adaptive_classifier_forward.4} parent=0 // pred_region
    _
  $region21: #{adaptive_classifier_forward.4} parent=0 // pred_fallthru
    _

// kernel: adaptive_classifier_forward.3
$region0: #{adaptive_classifier_forward.3}
  #allocation0 [shape = 'u32[]', space=smem, size = 0x4, offset = 0x4, fixed_abs, tag = 'smem constant byte address 0x4 - core index']
  #allocation1 [shape = 'u32[72,128]{1,0:T(1,128)}', space=vmem, size = 0x9000, scoped, tag = 'internal scratch']
  #allocation2 [shape = 'f32[8,16]{1,0:T(8,128)}', space=vmem, size = 0x1000, scoped, tag = 'scratch operand']
  %s0 = inlined_call_operand.vmem [shape: bf16[16,32], index: 0, kind: input, shape index: {}]
  %s1 = inlined_call_operand.vmem [shape: f32[8,64], index: 1, kind: input, shape index: {}]
  %s2 = inlined_call_operand.vmem [shape: bf16[32,64], index: 2, kind: input, shape index: {}]
  %s3 = inlined_call_operand.vmem [shape: bf16[64,32], index: 3, kind: input, shape index: {}]
  %s4 = inlined_call_operand.vmem [shape: f32[1,32], index: 4, kind: input, shape index: {}]
  %s5 = inlined_call_operand.vmem [shape: f32[1,16], index: 5, kind: input, shape index: {}]
  %s6 = inlined_call_operand.vmem [shape: f32[1,16], index: 6, kind: input, shape index: {}]
  %s7 = inlined_call_operand.vmem [shape: f32[1,16], index: 7, kind: input, shape index: {}]
  %s8 = inlined_call_operand.vmem [shape: f32[1,128], index: 8, kind: output, shape index: {}]
  %s9 = sld [smem:[#allocation0]]
  $region42: #{adaptive_classifier_forward.3} parent=0
    _
  %s11 = ssub.s32 1, %s9
  %s12 = scalar_select 0, %s11, %s9
  // Predicated region
  $region2: #{adaptive_classifier_forward.3} parent=0 // pred_check
    _
  $region3: #{adaptive_classifier_forward.3} parent=0 // pred_check_branch
    %14 = sbr.rel (0) target = $region5
  $region4: #{adaptive_classifier_forward.3} parent=0 // pred_region
    _
  $region5: #{adaptive_classifier_forward.3} parent=0 // pred_fallthru
    _
  // Predicated region
  $region6: #{adaptive_classifier_forward.3} parent=0 // pred_check
    _
  $region7: #{adaptive_classifier_forward.3} parent=0 // pred_check_branch
    %16 = sbr.rel (0) target = $region9
  $region8: #{adaptive_classifier_forward.3} parent=0 // pred_region
    _
  $region9: #{adaptive_classifier_forward.3} parent=0 // pred_fallthru
    _
  // Predicated region
  $region10: #{adaptive_classifier_forward.3} parent=0 // pred_check
    _
  $region11: #{adaptive_classifier_forward.3} parent=0 // pred_check_branch
    %18 = sbr.rel (0) target = $region13
  $region12: #{adaptive_classifier_forward.3} parent=0 // pred_region
    _
  $region13: #{adaptive_classifier_forward.3} parent=0 // pred_fallthru
    _
  // Predicated region
  $region14: #{adaptive_classifier_forward.3} parent=0 // pred_check
    _
  $region15: #{adaptive_classifier_forward.3} parent=0 // pred_check_branch
    %20 = sbr.rel (0) target = $region17
  $region16: #{adaptive_classifier_forward.3} parent=0 // pred_region
    _
  $region17: #{adaptive_classifier_forward.3} parent=0 // pred_fallthru
    _
  // Predicated region
  $region18: #{adaptive_classifier_forward.3} parent=0 // pred_check
    _
  $region19: #{adaptive_classifier_forward.3} parent=0 // pred_check_branch
    %22 = sbr.rel (0) target = $region21
  $region20: #{adaptive_classifier_forward.3} parent=0 // pred_region
    _
  $region21: #{adaptive_classifier_forward.3} parent=0 // pred_fallthru
    _
  // Predicated region
  $region22: #{adaptive_classifier_forward.3} parent=0 // pred_check
    _
  $region23: #{adaptive_classifier_forward.3} parent=0 // pred_check_branch
    %24 = sbr.rel (0) target = $region25
  $region24: #{adaptive_classifier_forward.3} parent=0 // pred_region
    _
  $region25: #{adaptive_classifier_forward.3} parent=0 // pred_fallthru
    _
  // Predicated region
  $region26: #{adaptive_classifier_forward.3} parent=0 // pred_check
    _
  $region27: #{adaptive_classifier_forward.3} parent=0 // pred_check_branch
    %26 = sbr.rel (0) target = $region29
  $region28: #{adaptive_classifier_forward.3} parent=0 // pred_region
    _
  $region29: #{adaptive_classifier_forward.3} parent=0 // pred_fallthru
    _
  // Predicated region
  $region30: #{adaptive_classifier_forward.3} parent=0 // pred_check
    _
  $region31: #{adaptive_classifier_forward.3} parent=0 // pred_check_branch
    %28 = sbr.rel (0) target = $region33
  $region32: #{adaptive_classifier_forward.3} parent=0 // pred_region
    _
  $region33: #{adaptive_classifier_forward.3} parent=0 // pred_fallthru
    _
  %v30 = vld [vmem:[%s0] sm:$0xf]
  %v31 = vld [vmem:[%s0 + $0x4] sm:$0xf]
  %v32 = vld [vmem:[%s2] sm:$0xf]
  %v33 = vld [vmem:[%s2 + $0x4] sm:$0xf]
  %v34 = vld [vmem:[%s2 + $0x8] sm:$0xf]
  %v35 = vld [vmem:[%s2 + $0xc] sm:$0xf]
  %v38 = vunpack.c.l.b16 %v30
  %v39 = vunpack.c.l.b16 %v31
  %v40 = vpack.c.b16 %v39, %v38
  %v45 = vunpack.c.l.b16 %v32
  %v46 = vunpack.c.l.b16 %v33
  %v47 = vunpack.c.l.b16 %v34
  %v48 = vunpack.c.l.b16 %v35
  %v49 = vpack.c.b16 %v46, %v45
  %v50 = vpack.c.b16 %v48, %v47
  %vm53 = vcmask 261120
  %v55 = vsel %vm53, %v40, 0
  %57 = vmatpush.bf16.msra.mxu0 0
  %58 = vmatpush.bf16.msra.mxu0 0
  %59 = vmatpush.bf16.msra.mxu0 0
  %60 = vmatpush.bf16.msra.mxu0 0
  %61 = vmatpush.bf16.msra.mxu0 0
  %62 = vmatpush.bf16.msra.mxu0 0
  %63 = vmatpush.bf16.msra.mxu0 %v50
  %64 = vmatpush.bf16.msra.mxu0 %v49
  %65 = vmatmul.bf16.gmra.mxu0 %v55
  %v66 = vpop.f32.mrf.mxu0
  %v67 = vadd.f32 0.0, %v66
  %v68 = vpop.f32.mrf.mxu0
  %v69 = vadd.f32 0.0, %v68
  %70 = vdwg.mxu0
  %v71 = vld [vmem:[%s3] sm:$0xf]
  %v72 = vld [vmem:[%s3 + $0x4] sm:$0xf]
  %v73 = vld [vmem:[%s3 + $0x8] sm:$0xf]
  %v74 = vld [vmem:[%s3 + $0xc] sm:$0xf]
  %v75 = vld [vmem:[%s3 + $0x10] sm:$0xf]
  %v76 = vld [vmem:[%s3 + $0x14] sm:$0xf]
  %v77 = vld [vmem:[%s3 + $0x18] sm:$0xf]
  %v78 = vld [vmem:[%s3 + $0x1c] sm:$0xf]
  %v79 = vld [vmem:[%s4] sm:$0x1]
  %v80 = vld [vmem:[%s1] sm:$0xff]
  %v82 = vrot.slane %v80, 1
  %v83 = vrot.slane %v80, 2
  %v84 = vrot.slane %v80, 3
  %v85 = vrot.slane %v80, 4
  %v86 = vrot.slane %v80, 5
  %v87 = vrot.slane %v80, 6
  %v88 = vrot.slane %v80, 7
  %v89 = vperm.slane %v80, 0
  %v90 = vperm.slane %v82, 0
  %v91 = vperm.slane %v83, 0
  %v92 = vperm.slane %v84, 0
  %v93 = vperm.slane %v85, 0
  %v94 = vperm.slane %v86, 0
  %v95 = vperm.slane %v87, 0
  %v96 = vperm.slane %v88, 0
  %v105 = vadd.f32 %v67, %v89
  %v106 = vadd.f32 %v69, %v89
  %v107 = vadd.f32 %v67, %v90
  %v108 = vadd.f32 %v69, %v90
  %v109 = vadd.f32 %v67, %v91
  %v110 = vadd.f32 %v69, %v91
  %v111 = vadd.f32 %v67, %v92
  %v112 = vadd.f32 %v69, %v92
  %v113 = vadd.f32 %v67, %v93
  %v114 = vadd.f32 %v69, %v93
  %v115 = vadd.f32 %v67, %v94
  %v116 = vadd.f32 %v69, %v94
  %v117 = vadd.f32 %v67, %v95
  %v118 = vadd.f32 %v69, %v95
  %v119 = vadd.f32 %v67, %v96
  %v120 = vadd.f32 %v69, %v96
  %v121 = vmax.f32 %v105, 0.0
  %v122 = vmax.f32 %v106, 0.0
  %v123 = vmax.f32 %v107, 0.0
  %v124 = vmax.f32 %v108, 0.0
  %v125 = vmax.f32 %v109, 0.0
  %v126 = vmax.f32 %v110, 0.0
  %v127 = vmax.f32 %v111, 0.0
  %v128 = vmax.f32 %v112, 0.0
  %v129 = vmax.f32 %v113, 0.0
  %v130 = vmax.f32 %v114, 0.0
  %v131 = vmax.f32 %v115, 0.0
  %v132 = vmax.f32 %v116, 0.0
  %v133 = vmax.f32 %v117, 0.0
  %v134 = vmax.f32 %v118, 0.0
  %v135 = vmax.f32 %v119, 0.0
  %v136 = vmax.f32 %v120, 0.0
  %v137 = vpack.c.bf16 %v122, %v121
  %v138 = vpack.c.bf16 %v124, %v123
  %v139 = vpack.c.bf16 %v126, %v125
  %v140 = vpack.c.bf16 %v128, %v127
  %v141 = vpack.c.bf16 %v130, %v129
  %v142 = vpack.c.bf16 %v132, %v131
  %v143 = vpack.c.bf16 %v134, %v133
  %v144 = vpack.c.bf16 %v136, %v135
  %v146 = vperm.slane %v79, 0
  %v156 = vunpack.c.l.b16 %v71
  %v157 = vunpack.c.l.b16 %v72
  %v158 = vunpack.c.l.b16 %v73
  %v159 = vunpack.c.l.b16 %v74
  %v160 = vunpack.c.l.b16 %v75
  %v161 = vunpack.c.l.b16 %v76
  %v162 = vunpack.c.l.b16 %v77
  %v163 = vunpack.c.l.b16 %v78
  %v164 = vpack.c.b16 %v157, %v156
  %v165 = vpack.c.b16 %v159, %v158
  %v166 = vpack.c.b16 %v161, %v160
  %v167 = vpack.c.b16 %v163, %v162
  %vm172 = vcmask 523264
  %v174 = vsel %vm172, %v137, 0
  %v177 = vsel %vm172, %v138, 0
  %v180 = vsel %vm172, %v139, 0
  %v183 = vsel %vm172, %v140, 0
  %v186 = vsel %vm172, %v141, 0
  %v189 = vsel %vm172, %v142, 0
  %v192 = vsel %vm172, %v143, 0
  %v195 = vsel %vm172, %v144, 0
  %197 = vmatpush.bf16.msra.mxu0 0
  %198 = vmatpush.bf16.msra.mxu0 0
  %199 = vmatpush.bf16.msra.mxu0 0
  %200 = vmatpush.bf16.msra.mxu0 0
  %201 = vmatpush.bf16.msra.mxu0 %v167
  %202 = vmatpush.bf16.msra.mxu0 %v166
  %203 = vmatpush.bf16.msra.mxu0 %v165
  %204 = vmatpush.bf16.msra.mxu0 %v164
  %205 = vmatmul.bf16.gmra.mxu0 %v174
  %v206 = vpop.f32.mrf.mxu0
  %v207 = vadd.f32 %v146, %v206
  %v208 = vpop.f32.mrf.mxu0
  %v209 = vadd.f32 %v146, %v208
  %210 = vmatmul.bf16.gmra.mxu0 %v177
  %v211 = vpop.f32.mrf.mxu0
  %v212 = vadd.f32 %v146, %v211
  %v213 = vpop.f32.mrf.mxu0
  %v214 = vadd.f32 %v146, %v213
  %215 = vmatmul.bf16.gmra.mxu0 %v180
  %v216 = vpop.f32.mrf.mxu0
  %v217 = vadd.f32 %v146, %v216
  %v218 = vpop.f32.mrf.mxu0
  %v219 = vadd.f32 %v146, %v218
  %220 = vmatmul.bf16.gmra.mxu0 %v183
  %v221 = vpop.f32.mrf.mxu0
  %v222 = vadd.f32 %v146, %v221
  %v223 = vpop.f32.mrf.mxu0
  %v224 = vadd.f32 %v146, %v223
  %225 = vmatmul.bf16.gmra.mxu0 %v186
  %v226 = vpop.f32.mrf.mxu0
  %v227 = vadd.f32 %v146, %v226
  %v228 = vpop.f32.mrf.mxu0
  %v229 = vadd.f32 %v146, %v228
  %230 = vmatmul.bf16.gmra.mxu0 %v189
  %v231 = vpop.f32.mrf.mxu0
  %v232 = vadd.f32 %v146, %v231
  %v233 = vpop.f32.mrf.mxu0
  %v234 = vadd.f32 %v146, %v233
  %235 = vmatmul.bf16.gmra.mxu0 %v192
  %v236 = vpop.f32.mrf.mxu0
  %v237 = vadd.f32 %v146, %v236
  %v238 = vpop.f32.mrf.mxu0
  %v239 = vadd.f32 %v146, %v238
  %240 = vmatmul.bf16.gmra.mxu0 %v195
  %v241 = vpop.f32.mrf.mxu0
  %v242 = vadd.f32 %v146, %v241
  %v243 = vpop.f32.mrf.mxu0
  %v244 = vadd.f32 %v146, %v243
  %245 = vdwg.mxu0
  %v246 = vmul.f32 %v207, %v207
  %v247 = vmul.f32 %v209, %v209
  %v248 = vmul.f32 %v212, %v212
  %v249 = vmul.f32 %v214, %v214
  %v250 = vmul.f32 %v217, %v217
  %v251 = vmul.f32 %v219, %v219
  %v252 = vmul.f32 %v222, %v222
  %v253 = vmul.f32 %v224, %v224
  %v254 = vmul.f32 %v227, %v227
  %v255 = vmul.f32 %v229, %v229
  %v256 = vmul.f32 %v232, %v232
  %v257 = vmul.f32 %v234, %v234
  %v258 = vmul.f32 %v237, %v237
  %v259 = vmul.f32 %v239, %v239
  %v260 = vmul.f32 %v242, %v242
  %v261 = vmul.f32 %v244, %v244
  %v262 = vsel %vm53, %v246, 0.0
  %263 = vadd.xlane.f32.xlu0 %v262
  %v264 = vpop.xlane.xlu0 %263
  %v265 = vsel %vm53, %v247, 0.0
  %266 = vadd.xlane.f32.xlu0 %v265
  %v267 = vpop.xlane.xlu0 %266
  %v268 = vsel %vm53, %v248, 0.0
  %269 = vadd.xlane.f32.xlu0 %v268
  %v270 = vpop.xlane.xlu0 %269
  %v271 = vsel %vm53, %v249, 0.0
  %272 = vadd.xlane.f32.xlu0 %v271
  %v273 = vpop.xlane.xlu0 %272
  %v274 = vsel %vm53, %v250, 0.0
  %275 = vadd.xlane.f32.xlu0 %v274
  %v276 = vpop.xlane.xlu0 %275
  %v277 = vsel %vm53, %v251, 0.0
  %278 = vadd.xlane.f32.xlu0 %v277
  %v279 = vpop.xlane.xlu0 %278
  %v280 = vsel %vm53, %v252, 0.0
  %281 = vadd.xlane.f32.xlu0 %v280
  %v282 = vpop.xlane.xlu0 %281
  %v283 = vsel %vm53, %v253, 0.0
  %284 = vadd.xlane.f32.xlu0 %v283
  %v285 = vpop.xlane.xlu0 %284
  %v286 = vsel %vm53, %v254, 0.0
  %287 = vadd.xlane.f32.xlu0 %v286
  %v288 = vpop.xlane.xlu0 %287
  %v289 = vsel %vm53, %v255, 0.0
  %290 = vadd.xlane.f32.xlu0 %v289
  %v291 = vpop.xlane.xlu0 %290
  %v292 = vsel %vm53, %v256, 0.0
  %293 = vadd.xlane.f32.xlu0 %v292
  %v294 = vpop.xlane.xlu0 %293
  %v295 = vsel %vm53, %v257, 0.0
  %296 = vadd.xlane.f32.xlu0 %v295
  %v297 = vpop.xlane.xlu0 %296
  %v298 = vsel %vm53, %v258, 0.0
  %299 = vadd.xlane.f32.xlu0 %v298
  %v300 = vpop.xlane.xlu0 %299
  %v301 = vsel %vm53, %v259, 0.0
  %302 = vadd.xlane.f32.xlu0 %v301
  %v303 = vpop.xlane.xlu0 %302
  %v304 = vsel %vm53, %v260, 0.0
  %305 = vadd.xlane.f32.xlu0 %v304
  %v306 = vpop.xlane.xlu0 %305
  %v307 = vsel %vm53, %v261, 0.0
  %308 = vadd.xlane.f32.xlu0 %v307
  %v309 = vpop.xlane.xlu0 %308
  %v310 = vrsqrt.pop %v264
  %v311 = vmul.f32 %v310, %v264
  %v312 = vmul.f32 %v311, %v310
  %v313 = vmul.f32 0.5, %v312
  %v314 = vsub.f32 1.5, %v313
  %v315 = vmul.f32 %v310, %v314
  %v316 = vmul.f32 %v264, %v315
  %vm317 = vcmp.eq.f32.partialorder %v264, inf
  %v318 = vsel %vm317, %v264, %v316
  %vm319 = vcmp.eq.f32.partialorder %v264, 0.0
  %v320 = vand.u32 %v264, 2147483648
  %v321 = vsel %vm319, %v320, %v318
  %v322 = vrsqrt.pop %v267
  %v323 = vmul.f32 %v322, %v267
  %v324 = vmul.f32 %v323, %v322
  %v325 = vmul.f32 0.5, %v324
  %v326 = vsub.f32 1.5, %v325
  %v327 = vmul.f32 %v322, %v326
  %v328 = vmul.f32 %v267, %v327
  %vm329 = vcmp.eq.f32.partialorder %v267, inf
  %v330 = vsel %vm329, %v267, %v328
  %vm331 = vcmp.eq.f32.partialorder %v267, 0.0
  %v332 = vand.u32 %v267, 2147483648
  %v333 = vsel %vm331, %v332, %v330
  %v334 = vrsqrt.pop %v270
  %v335 = vmul.f32 %v334, %v270
  %v336 = vmul.f32 %v335, %v334
  %v337 = vmul.f32 0.5, %v336
  %v338 = vsub.f32 1.5, %v337
  %v339 = vmul.f32 %v334, %v338
  %v340 = vmul.f32 %v270, %v339
  %vm341 = vcmp.eq.f32.partialorder %v270, inf
  %v342 = vsel %vm341, %v270, %v340
  %vm343 = vcmp.eq.f32.partialorder %v270, 0.0
  %v344 = vand.u32 %v270, 2147483648
  %v345 = vsel %vm343, %v344, %v342
  %v346 = vrsqrt.pop %v273
  %v347 = vmul.f32 %v346, %v273
  %v348 = vmul.f32 %v347, %v346
  %v349 = vmul.f32 0.5, %v348
  %v350 = vsub.f32 1.5, %v349
  %v351 = vmul.f32 %v346, %v350
  %v352 = vmul.f32 %v273, %v351
  %vm353 = vcmp.eq.f32.partialorder %v273, inf
  %v354 = vsel %vm353, %v273, %v352
  %vm355 = vcmp.eq.f32.partialorder %v273, 0.0
  %v356 = vand.u32 %v273, 2147483648
  %v357 = vsel %vm355, %v356, %v354
  %v358 = vrsqrt.pop %v276
  %v359 = vmul.f32 %v358, %v276
  %v360 = vmul.f32 %v359, %v358
  %v361 = vmul.f32 0.5, %v360
  %v362 = vsub.f32 1.5, %v361
  %v363 = vmul.f32 %v358, %v362
  %v364 = vmul.f32 %v276, %v363
  %vm365 = vcmp.eq.f32.partialorder %v276, inf
  %v366 = vsel %vm365, %v276, %v364
  %vm367 = vcmp.eq.f32.partialorder %v276, 0.0
  %v368 = vand.u32 %v276, 2147483648
  %v369 = vsel %vm367, %v368, %v366
  %v370 = vrsqrt.pop %v279
  %v371 = vmul.f32 %v370, %v279
  %v372 = vmul.f32 %v371, %v370
  %v373 = vmul.f32 0.5, %v372
  %v374 = vsub.f32 1.5, %v373
  %v375 = vmul.f32 %v370, %v374
  %v376 = vmul.f32 %v279, %v375
  %vm377 = vcmp.eq.f32.partialorder %v279, inf
  %v378 = vsel %vm377, %v279, %v376
  %vm379 = vcmp.eq.f32.partialorder %v279, 0.0
  %v380 = vand.u32 %v279, 2147483648
  %v381 = vsel %vm379, %v380, %v378
  %v382 = vrsqrt.pop %v282
  %v383 = vmul.f32 %v382, %v282
  %v384 = vmul.f32 %v383, %v382
  %v385 = vmul.f32 0.5, %v384
  %v386 = vsub.f32 1.5, %v385
  %v387 = vmul.f32 %v382, %v386
  %v388 = vmul.f32 %v282, %v387
  %vm389 = vcmp.eq.f32.partialorder %v282, inf
  %v390 = vsel %vm389, %v282, %v388
  %vm391 = vcmp.eq.f32.partialorder %v282, 0.0
  %v392 = vand.u32 %v282, 2147483648
  %v393 = vsel %vm391, %v392, %v390
  %v394 = vrsqrt.pop %v285
  %v395 = vmul.f32 %v394, %v285
  %v396 = vmul.f32 %v395, %v394
  %v397 = vmul.f32 0.5, %v396
  %v398 = vsub.f32 1.5, %v397
  %v399 = vmul.f32 %v394, %v398
  %v400 = vmul.f32 %v285, %v399
  %vm401 = vcmp.eq.f32.partialorder %v285, inf
  %v402 = vsel %vm401, %v285, %v400
  %vm403 = vcmp.eq.f32.partialorder %v285, 0.0
  %v404 = vand.u32 %v285, 2147483648
  %v405 = vsel %vm403, %v404, %v402
  %v406 = vrsqrt.pop %v288
  %v407 = vmul.f32 %v406, %v288
  %v408 = vmul.f32 %v407, %v406
  %v409 = vmul.f32 0.5, %v408
  %v410 = vsub.f32 1.5, %v409
  %v411 = vmul.f32 %v406, %v410
  %v412 = vmul.f32 %v288, %v411
  %vm413 = vcmp.eq.f32.partialorder %v288, inf
  %v414 = vsel %vm413, %v288, %v412
  %vm415 = vcmp.eq.f32.partialorder %v288, 0.0
  %v416 = vand.u32 %v288, 2147483648
  %v417 = vsel %vm415, %v416, %v414
  %v418 = vrsqrt.pop %v291
  %v419 = vmul.f32 %v418, %v291
  %v420 = vmul.f32 %v419, %v418
  %v421 = vmul.f32 0.5, %v420
  %v422 = vsub.f32 1.5, %v421
  %v423 = vmul.f32 %v418, %v422
  %v424 = vmul.f32 %v291, %v423
  %vm425 = vcmp.eq.f32.partialorder %v291, inf
  %v426 = vsel %vm425, %v291, %v424
  %vm427 = vcmp.eq.f32.partialorder %v291, 0.0
  %v428 = vand.u32 %v291, 2147483648
  %v429 = vsel %vm427, %v428, %v426
  %v430 = vrsqrt.pop %v294
  %v431 = vmul.f32 %v430, %v294
  %v432 = vmul.f32 %v431, %v430
  %v433 = vmul.f32 0.5, %v432
  %v434 = vsub.f32 1.5, %v433
  %v435 = vmul.f32 %v430, %v434
  %v436 = vmul.f32 %v294, %v435
  %vm437 = vcmp.eq.f32.partialorder %v294, inf
  %v438 = vsel %vm437, %v294, %v436
  %vm439 = vcmp.eq.f32.partialorder %v294, 0.0
  %v440 = vand.u32 %v294, 2147483648
  %v441 = vsel %vm439, %v440, %v438
  %v442 = vrsqrt.pop %v297
  %v443 = vmul.f32 %v442, %v297
  %v444 = vmul.f32 %v443, %v442
  %v445 = vmul.f32 0.5, %v444
  %v446 = vsub.f32 1.5, %v445
  %v447 = vmul.f32 %v442, %v446
  %v448 = vmul.f32 %v297, %v447
  %vm449 = vcmp.eq.f32.partialorder %v297, inf
  %v450 = vsel %vm449, %v297, %v448
  %vm451 = vcmp.eq.f32.partialorder %v297, 0.0
  %v452 = vand.u32 %v297, 2147483648
  %v453 = vsel %vm451, %v452, %v450
  %v454 = vrsqrt.pop %v300
  %v455 = vmul.f32 %v454, %v300
  %v456 = vmul.f32 %v455, %v454
  %v457 = vmul.f32 0.5, %v456
  %v458 = vsub.f32 1.5, %v457
  %v459 = vmul.f32 %v454, %v458
  %v460 = vmul.f32 %v300, %v459
  %vm461 = vcmp.eq.f32.partialorder %v300, inf
  %v462 = vsel %vm461, %v300, %v460
  %vm463 = vcmp.eq.f32.partialorder %v300, 0.0
  %v464 = vand.u32 %v300, 2147483648
  %v465 = vsel %vm463, %v464, %v462
  %v466 = vrsqrt.pop %v303
  %v467 = vmul.f32 %v466, %v303
  %v468 = vmul.f32 %v467, %v466
  %v469 = vmul.f32 0.5, %v468
  %v470 = vsub.f32 1.5, %v469
  %v471 = vmul.f32 %v466, %v470
  %v472 = vmul.f32 %v303, %v471
  %vm473 = vcmp.eq.f32.partialorder %v303, inf
  %v474 = vsel %vm473, %v303, %v472
  %vm475 = vcmp.eq.f32.partialorder %v303, 0.0
  %v476 = vand.u32 %v303, 2147483648
  %v477 = vsel %vm475, %v476, %v474
  %v478 = vrsqrt.pop %v306
  %v479 = vmul.f32 %v478, %v306
  %v480 = vmul.f32 %v479, %v478
  %v481 = vmul.f32 0.5, %v480
  %v482 = vsub.f32 1.5, %v481
  %v483 = vmul.f32 %v478, %v482
  %v484 = vmul.f32 %v306, %v483
  %vm485 = vcmp.eq.f32.partialorder %v306, inf
  %v486 = vsel %vm485, %v306, %v484
  %vm487 = vcmp.eq.f32.partialorder %v306, 0.0
  %v488 = vand.u32 %v306, 2147483648
  %v489 = vsel %vm487, %v488, %v486
  %v490 = vrsqrt.pop %v309
  %v491 = vmul.f32 %v490, %v309
  %v492 = vmul.f32 %v491, %v490
  %v493 = vmul.f32 0.5, %v492
  %v494 = vsub.f32 1.5, %v493
  %v495 = vmul.f32 %v490, %v494
  %v496 = vmul.f32 %v309, %v495
  %vm497 = vcmp.eq.f32.partialorder %v309, inf
  %v498 = vsel %vm497, %v309, %v496
  %vm499 = vcmp.eq.f32.partialorder %v309, 0.0
  %v500 = vand.u32 %v309, 2147483648
  %v501 = vsel %vm499, %v500, %v498
  %v518 = vlaneseq
  %v519 = vand.u32 %v518, 127
  %v520 = vperm.slane %v321, %v519
  %v521 = vadd.s32 %v519, 4294967288
  %v522 = vperm.slane %v333, %v521
  %vm523 = vcmask 130112
  %v524 = vsel %vm523, %v522, %v520
  %v525 = vperm.slane %v345, %v519
  %v526 = vperm.slane %v357, %v521
  %v527 = vsel %vm523, %v526, %v525
  %v528 = vperm.slane %v369, %v519
  %v529 = vperm.slane %v381, %v521
  %v530 = vsel %vm523, %v529, %v528
  %v531 = vperm.slane %v393, %v519
  %v532 = vperm.slane %v405, %v521
  %v533 = vsel %vm523, %v532, %v531
  %v534 = vperm.slane %v417, %v519
  %v535 = vperm.slane %v429, %v521
  %v536 = vsel %vm523, %v535, %v534
  %v537 = vperm.slane %v441, %v519
  %v538 = vperm.slane %v453, %v521
  %v539 = vsel %vm523, %v538, %v537
  %v540 = vperm.slane %v465, %v519
  %v541 = vperm.slane %v477, %v521
  %v542 = vsel %vm523, %v541, %v540
  %v543 = vperm.slane %v489, %v519
  %v544 = vperm.slane %v501, %v521
  %v545 = vsel %vm523, %v544, %v543
  %vm546 = vcmask 1041409
  %v547 = vsel %vm546, %v527, %v524
  %vm548 = vcmask 1042434
  %v549 = vsel %vm548, %v530, %v547
  %vm550 = vcmask 1043459
  %v551 = vsel %vm550, %v533, %v549
  %vm552 = vcmask 1044484
  %v553 = vsel %vm552, %v536, %v551
  %vm554 = vcmask 1045509
  %v555 = vsel %vm554, %v539, %v553
  %vm556 = vcmask 1046534
  %v557 = vsel %vm556, %v542, %v555
  %vm558 = vcmask 1047559
  %v559 = vsel %vm558, %v545, %v557
  %vm561 = vcmask 130048
  %562 = vst.msk [vmem:[#allocation2] sm:$0xff] %vm561, %v559
  %v563 = vld [vmem:[#allocation2] sm:$0xff]
  %v564 = vld [vmem:[%s5] sm:$0x1]
  %v565 = vld [vmem:[%s6] sm:$0x1]
  %v566 = vld [vmem:[%s7] sm:$0x1]
  %v567 = vlaneseq
  %v568 = vshrl.u32 %v567, 7
  %v569 = vcvt.f32.s32.to.zero.pseudo %v564
  %v570 = vperm.slane %v569, 0
  %vm571 = vcmp.eq.s32.totalorder %v568, %v570
  %vm572 = vcmp.ge.s32.totalorder %v569, 0
  %v573 = vsel %vm572, 1, 0
  %v574 = vperm.slane %v573, 0
  %vm575 = vcmp.eq.s32.totalorder %v574, 1
  %vm576 = vmand %vm571, %vm575
  %v577 = vsel %vm576, 1.0, 0.0
  %v579 = vperm.slane %v565, 0
  %v581 = vmul.f32 %v577, %v579
  %vm582 = vcmp.eq.s32.totalorder %v568, 4
  %v583 = vsel %vm582, 1.0, 0.0
  %v584 = vmul.f32 %v583, %v579
  %vm585 = vcmp.le.s32.totalorder %v568, 4
  %v586 = vadd.f32 %v581, %v584
  %v587 = vsub.f32 1.0, %v581
  %v588 = vsel %vm585, %v587, 0.0
  %vm589 = vcmp.gt.f32.partialorder %v586, 0.0
  %v590 = vsel %vm589, %v563, -1e+30
  %v591 = vsel %vm561, %v590, -inf
  %v592 = vrot.slane %v591, 4
  %v593 = vmax.f32 %v591, %v592
  %v594 = vrot.slane %v593, 2
  %v595 = vmax.f32 %v593, %v594
  %v596 = vrot.slane %v595, 1
  %v597 = vmax.f32 %v595, %v596
  %v598 = vsub.f32 %v590, %v597
  %v599 = vmul.f32 %v598, 1.442695
  %v600 = vpow.pop %v599
  %v601 = vsel %vm561, %v600, 0.0
  %v602 = vrot.slane %v601, 4
  %v603 = vadd.f32 %v601, %v602
  %v604 = vrot.slane %v603, 2
  %v605 = vadd.f32 %v603, %v604
  %v606 = vrot.slane %v605, 1
  %v607 = vadd.f32 %v605, %v606
  %v608 = vlog2.pop %v607
  %v609 = vmul.f32 %v608, 0.6931472
  %v610 = vadd.f32 %v597, %v609
  %v611 = vsub.f32 %v590, %v610
  %vm612 = vcmp.gt.f32.partialorder %v588, 0.0
  %v613 = vsel %vm612, %v563, -1e+30
  %v614 = vsel %vm561, %v613, -inf
  %v615 = vrot.slane %v614, 4
  %v616 = vmax.f32 %v614, %v615
  %v617 = vrot.slane %v616, 2
  %v618 = vmax.f32 %v616, %v617
  %v619 = vrot.slane %v618, 1
  %v620 = vmax.f32 %v618, %v619
  %v621 = vsub.f32 %v613, %v620
  %v622 = vmul.f32 %v621, 1.442695
  %v623 = vpow.pop %v622
  %v624 = vsel %vm561, %v623, 0.0
  %v625 = vrot.slane %v624, 4
  %v626 = vadd.f32 %v624, %v625
  %v627 = vrot.slane %v626, 2
  %v628 = vadd.f32 %v626, %v627
  %v629 = vrot.slane %v628, 1
  %v630 = vadd.f32 %v628, %v629
  %v631 = vlog2.pop %v630
  %v632 = vmul.f32 %v631, 0.6931472
  %v633 = vadd.f32 %v620, %v632
  %v634 = vsub.f32 %v613, %v633
  %v635 = vmul.f32 %v611, %v581
  %v636 = vsel %vm561, %v635, 0.0
  %v637 = vrot.slane %v636, 4
  %v638 = vadd.f32 %v636, %v637
  %v639 = vrot.slane %v638, 2
  %v640 = vadd.f32 %v638, %v639
  %v641 = vrot.slane %v640, 1
  %v642 = vadd.f32 %v640, %v641
  %v643 = vmul.f32 %v634, %v584
  %v644 = vsel %vm561, %v643, 0.0
  %v645 = vrot.slane %v644, 4
  %v646 = vadd.f32 %v644, %v645
  %v647 = vrot.slane %v646, 2
  %v648 = vadd.f32 %v646, %v647
  %v649 = vrot.slane %v648, 1
  %v650 = vadd.f32 %v648, %v649
  %v651 = vadd.f32 %v642, %v650
  %v652 = vsub.f32 0.0, %v651
  %v653 = vsel %vm585, %v563, -1e+30
  %v654 = vsel %vm561, %v653, -inf
  %v655 = vrot.slane %v654, 4
  %v656 = vmax.f32 %v654, %v655
  %v657 = vrot.slane %v656, 2
  %v658 = vmax.f32 %v656, %v657
  %v659 = vrot.slane %v658, 1
  %v660 = vmax.f32 %v658, %v659
  %v661 = vsub.f32 %v653, %v660
  %v662 = vmul.f32 %v661, 1.442695
  %v663 = vpow.pop %v662
  %v664 = vsel %vm561, %v663, 0.0
  %v665 = vrot.slane %v664, 4
  %v666 = vadd.f32 %v664, %v665
  %v667 = vrot.slane %v666, 2
  %v668 = vadd.f32 %v666, %v667
  %v669 = vrot.slane %v668, 1
  %v670 = vadd.f32 %v668, %v669
  %v671 = vlog2.pop %v670
  %v672 = vmul.f32 %v671, 0.6931472
  %v673 = vadd.f32 %v660, %v672
  %v674 = vsub.f32 %v673, %v563
  %v676 = vperm.slane %v566, 0
  %v678 = vmul.f32 %v674, %v676
  %vm679 = vcmask 122880
  %v680 = vsel %vm679, %v652, 0.0
  %681 = vadd.xlane.f32.xlu0 %v680
  %v682 = vpop.xlane.xlu0 %681
  %v683 = vrot.slane %v682, 4
  %v684 = vadd.f32 %v682, %v683
  %v685 = vrot.slane %v684, 2
  %v686 = vadd.f32 %v684, %v685
  %v687 = vrot.slane %v686, 1
  %v688 = vadd.f32 %v686, %v687
  %s689 = vtos %v688
  %v691 = vrot.slane %v678, 4
  %v693 = vsel %vm679, %v691, 0.0
  %694 = vadd.xlane.f32.xlu0 %v693
  %v695 = vpop.xlane.xlu0 %694
  %v696 = vrot.slane %v695, 4
  %v697 = vadd.f32 %v695, %v696
  %v698 = vrot.slane %v697, 2
  %v699 = vadd.f32 %v697, %v698
  %v700 = vrot.slane %v699, 1
  %v701 = vadd.f32 %v699, %v700
  %s702 = vtos %v701
  %vm703 = vcmp.eq.s32.totalorder %v519, 0
  %v704 = vstv %s689
  %v705 = vsel %vm703, %v704, 0.0
  %vm706 = vcmp.eq.s32.totalorder %v519, 1
  %v707 = vstv %s702
  %v708 = vsel %vm706, %v707, 0.0
  %v709 = vadd.f32 %v705, %v708
  %710 = vst [vmem:[%s8] sm:$0x1] %v709
  // Predicated region
  $region34: #{adaptive_classifier_forward.3} parent=0 // pred_check
    _
  $region35: #{adaptive_classifier_forward.3} parent=0 // pred_check_branch
    %712 = sbr.rel (0) target = $region37
  $region36: #{adaptive_classifier_forward.3} parent=0 // pred_region
    _
  $region37: #{adaptive_classifier_forward.3} parent=0 // pred_fallthru
    _
  // Predicated region
  $region38: #{adaptive_classifier_forward.3} parent=0 // pred_check
    _
  $region39: #{adaptive_classifier_forward.3} parent=0 // pred_check_branch
    %714 = sbr.rel (0) target = $region41
  $region40: #{adaptive_classifier_forward.3} parent=0 // pred_region
    _
  $region41: #{adaptive_classifier_forward.3} parent=0 // pred_fallthru
    _

// kernel: adaptive_classifier_forward.5
$region0: #{adaptive_classifier_forward.5}
  #allocation0 [shape = 'u32[]', space=smem, size = 0x4, offset = 0x4, fixed_abs, tag = 'smem constant byte address 0x4 - core index']
  #allocation1 [shape = 'u32[72,128]{1,0:T(1,128)}', space=vmem, size = 0x9000, scoped, tag = 'internal scratch']
  #allocation2 [shape = 'f32[16,1]{1,0:T(8,128)}', space=vmem, size = 0x2000, scoped, tag = 'scratch operand']
  #allocation3 [shape = 'f32[16,1]{1,0:T(8,128)}', space=vmem, size = 0x2000, scoped, tag = 'scratch operand']
  #allocation4 [shape = 'f32[16,1]{1,0:T(8,128)}', space=vmem, size = 0x2000, scoped, tag = 'scratch operand']
  #allocation5 [shape = 'f32[16,1]{1,0:T(8,128)}', space=vmem, size = 0x2000, scoped, tag = 'scratch operand']
  %s0 = inlined_call_operand.vmem [shape: bf16[16,32], index: 0, kind: input, shape index: {}, may-alias: {0,1}]
  %s1 = inlined_call_operand.vmem [shape: bf16[16,32], index: 1, kind: input, shape index: {}, may-alias: {0,1}]
  %s2 = inlined_call_operand.vmem [shape: f32[16,1], index: 2, kind: input, shape index: {}]
  %s3 = inlined_call_operand.vmem [shape: f32[1,16], index: 3, kind: input, shape index: {}]
  %s4 = inlined_call_operand.vmem [shape: f32[1,128], index: 4, kind: output, shape index: {}]
  %s5 = sld [smem:[#allocation0]]
  $region34: #{adaptive_classifier_forward.5} parent=0
    _
  %s7 = ssub.s32 1, %s5
  %s8 = scalar_select 0, %s7, %s5
  // Predicated region
  $region2: #{adaptive_classifier_forward.5} parent=0 // pred_check
    _
  $region3: #{adaptive_classifier_forward.5} parent=0 // pred_check_branch
    %10 = sbr.rel (0) target = $region5
  $region4: #{adaptive_classifier_forward.5} parent=0 // pred_region
    _
  $region5: #{adaptive_classifier_forward.5} parent=0 // pred_fallthru
    _
  // Predicated region
  $region6: #{adaptive_classifier_forward.5} parent=0 // pred_check
    _
  $region7: #{adaptive_classifier_forward.5} parent=0 // pred_check_branch
    %12 = sbr.rel (0) target = $region9
  $region8: #{adaptive_classifier_forward.5} parent=0 // pred_region
    _
  $region9: #{adaptive_classifier_forward.5} parent=0 // pred_fallthru
    _
  // Predicated region
  $region10: #{adaptive_classifier_forward.5} parent=0 // pred_check
    _
  $region11: #{adaptive_classifier_forward.5} parent=0 // pred_check_branch
    %14 = sbr.rel (0) target = $region13
  $region12: #{adaptive_classifier_forward.5} parent=0 // pred_region
    _
  $region13: #{adaptive_classifier_forward.5} parent=0 // pred_fallthru
    _
  // Predicated region
  $region14: #{adaptive_classifier_forward.5} parent=0 // pred_check
    _
  $region15: #{adaptive_classifier_forward.5} parent=0 // pred_check_branch
    %16 = sbr.rel (0) target = $region17
  $region16: #{adaptive_classifier_forward.5} parent=0 // pred_region
    _
  $region17: #{adaptive_classifier_forward.5} parent=0 // pred_fallthru
    _
  %p18 = scmp.eq.s32.totalorder 0, 0
  // Predicated region
  $region18: #{adaptive_classifier_forward.5} parent=0 // pred_check
    %p19 = pneg %p18
  $region19: #{adaptive_classifier_forward.5} parent=0 // pred_check_branch
    %21 = sbr.rel (%p19) target = $region21
  $region20: #{adaptive_classifier_forward.5} parent=0 // pred_region
    %vm22 = vcmask 7168
    %23 = vst.msk [vmem:[#allocation2] sm:$0xff] %vm22, -1e+30
    %24 = vst.msk [vmem:[#allocation2 + $0x8] sm:$0xff] %vm22, -1e+30
    %25 = vst.msk [vmem:[#allocation3] sm:$0xff] %vm22, 0.0
    %26 = vst.msk [vmem:[#allocation3 + $0x8] sm:$0xff] %vm22, 0.0
    %27 = vst.msk [vmem:[#allocation4] sm:$0xff] %vm22, -1e+30
    %28 = vst.msk [vmem:[#allocation4 + $0x8] sm:$0xff] %vm22, -1e+30
    %29 = vst.msk [vmem:[#allocation5] sm:$0xff] %vm22, 0.0
    %30 = vst.msk [vmem:[#allocation5 + $0x8] sm:$0xff] %vm22, 0.0
  $region21: #{adaptive_classifier_forward.5} parent=0 // pred_fallthru
    _
  %v31 = vld [vmem:[%s0] sm:$0xf]
  %v32 = vld [vmem:[%s0 + $0x4] sm:$0xf]
  %v33 = vld [vmem:[%s1] sm:$0xf]
  %v34 = vld [vmem:[%s1 + $0x4] sm:$0xf]
  %v37 = vunpack.c.l.b16 %v31
  %v38 = vunpack.c.l.b16 %v32
  %v39 = vpack.c.b16 %v38, %v37
  %v42 = vunpack.c.l.b16 %v33
  %v43 = vunpack.c.l.b16 %v34
  %v44 = vpack.c.b16 %v43, %v42
  %vm45 = vcmask 261120
  %v47 = vsel %vm45, %v39, 0
  %v50 = vsel %vm45, %v44, 0
  %52 = vmatpush.bf16.xpose.msra.mxu0 0
  %53 = vmatpush.bf16.xpose.msra.mxu0 0
  %54 = vmatpush.bf16.xpose.msra.mxu0 0
  %55 = vmatpush.bf16.xpose.msra.mxu0 0
  %56 = vmatpush.bf16.xpose.msra.mxu0 0
  %57 = vmatpush.bf16.xpose.msra.mxu0 0
  %58 = vmatpush.bf16.xpose.msra.mxu0 0
  %59 = vmatpush.bf16.xpose.msra.mxu0 %v50
  %60 = vmatmul.bf16.gmra.mxu0 %v47
  %v61 = vpop.f32.mrf.mxu0
  %v62 = vadd.f32 0.0, %v61
  %v63 = vpop.f32.mrf.mxu0
  %v64 = vadd.f32 0.0, %v63
  %65 = vdwg.mxu0
  %v66 = vmul.f32 %v62, 2.0
  %v67 = vmul.f32 %v64, 2.0
  %v68 = vsub.f32 2.0, %v66
  %v69 = vsub.f32 2.0, %v67
  %vm70 = vcmp.le.f32.partialorder %v68, 0.0
  %vm71 = vcmp.le.f32.partialorder %v69, 0.0
  %v72 = vmax.f32 %v68, 1e-16
  %v73 = vmax.f32 %v69, 1e-16
  %v74 = vrsqrt.pop %v72
  %v75 = vmul.f32 %v74, %v72
  %v76 = vmul.f32 %v75, %v74
  %v77 = vmul.f32 0.5, %v76
  %v78 = vsub.f32 1.5, %v77
  %v79 = vmul.f32 %v74, %v78
  %v80 = vmul.f32 %v72, %v79
  %vm81 = vcmp.eq.f32.partialorder %v72, inf
  %v82 = vsel %vm81, %v72, %v80
  %vm83 = vcmp.eq.f32.partialorder %v72, 0.0
  %v84 = vand.u32 %v72, 2147483648
  %v85 = vsel %vm83, %v84, %v82
  %v86 = vrsqrt.pop %v73
  %v87 = vmul.f32 %v86, %v73
  %v88 = vmul.f32 %v87, %v86
  %v89 = vmul.f32 0.5, %v88
  %v90 = vsub.f32 1.5, %v89
  %v91 = vmul.f32 %v86, %v90
  %v92 = vmul.f32 %v73, %v91
  %vm93 = vcmp.eq.f32.partialorder %v73, inf
  %v94 = vsel %vm93, %v73, %v92
  %vm95 = vcmp.eq.f32.partialorder %v73, 0.0
  %v96 = vand.u32 %v73, 2147483648
  %v97 = vsel %vm95, %v96, %v94
  %v98 = vsel %vm70, 0.0, %v85
  %v99 = vsel %vm71, 0.0, %v97
  %v100 = vld [vmem:[%s2] sm:$0xff]
  %v101 = vld [vmem:[%s2 + $0x8] sm:$0xff]
  %v102 = vld [vmem:[%s3] sm:$0x1]
  %104 = vset.pattern.permute.xlu0 0
  %105 = vperm.xlu0 %104, %v100
  %v106 = vpop.permute.xlu0 %105
  %109 = vset.pattern.permute.xlu0 0
  %110 = vperm.xlu0 %109, %v101
  %v111 = vpop.permute.xlu0 %110
  %v114 = vperm.slane %v102, 0
  %vm116 = vcmp.eq.f32.partialorder %v106, %v114
  %vm117 = vcmp.eq.f32.partialorder %v111, %v114
  %vm118 = vcmp.ge.f32.partialorder %v100, 0.0
  %vm119 = vcmp.ge.f32.partialorder %v101, 0.0
  %vm120 = vcmp.ge.f32.partialorder %v102, 0.0
  %v121 = vsel %vm118, 1, 0
  %v122 = vsel %vm119, 1, 0
  %123 = vset.pattern.permute.xlu0 0
  %124 = vperm.xlu0 %123, %v121
  %v125 = vpop.permute.xlu0 %124
  %126 = vset.pattern.permute.xlu0 0
  %127 = vperm.xlu0 %126, %v122
  %v128 = vpop.permute.xlu0 %127
  %vm129 = vcmp.eq.s32.totalorder %v125, 1
  %vm130 = vcmp.eq.s32.totalorder %v128, 1
  %v131 = vsel %vm120, 1, 0
  %v132 = vperm.slane %v131, 0
  %vm133 = vcmp.eq.s32.totalorder %v132, 1
  %vm134 = vmand %vm129, %vm133
  %vm135 = vmand %vm130, %vm133
  %v136 = vlaneseq
  %v137 = vshrl.u32 %v136, 7
  %v138 = vadd.s32 %v137, 8
  %s139 = smul.u32 0, 16
  %v140 = vstv %s139
  %v141 = vadd.s32 %v137, %v140
  %v142 = vadd.s32 %v138, %v140
  %v143 = vlaneseq
  %v144 = vand.u32 %v143, 127
  %s145 = smul.u32 0, 16
  %v146 = vstv %s145
  %v147 = vadd.s32 %v144, %v146
  %vm148 = vcmp.ne.s32.totalorder %v141, %v147
  %vm149 = vcmp.ne.s32.totalorder %v142, %v147
  %vm150 = vmand %vm116, %vm148
  %vm151 = vmand %vm117, %vm149
  %vm152 = vcmp.gt.f32.partialorder %v98, 0.7
  %vm153 = vcmp.gt.f32.partialorder %v99, 0.7
  %vm154 = vmand %vm150, %vm152
  %vm155 = vmand %vm151, %vm153
  %vm156 = vmand %vm154, %vm134
  %vm157 = vmand %vm155, %vm135
  %v158 = vsel %vm156, 1, 0
  %v159 = vsel %vm157, 1, 0
  %v160 = vcvt.s32.f32 %v158
  %v161 = vcvt.s32.f32 %v159
  %vm162 = vmxor %vm116, 1
  %vm163 = vmxor %vm117, 1
  %vm164 = vcmp.lt.f32.partialorder %v98, 1.4
  %vm165 = vcmp.lt.f32.partialorder %v99, 1.4
  %vm166 = vmand %vm162, %vm164
  %vm167 = vmand %vm163, %vm165
  %vm168 = vmand %vm166, %vm134
  %vm169 = vmand %vm167, %vm135
  %v170 = vsel %vm168, 1, 0
  %v171 = vsel %vm169, 1, 0
  %v172 = vcvt.s32.f32 %v170
  %v173 = vcvt.s32.f32 %v171
  %v174 = vsub.f32 %v98, 0.7
  %v175 = vsub.f32 %v99, 0.7
  %v176 = vmul.f32 %v174, %v174
  %v177 = vmul.f32 %v175, %v175
  %v178 = vmul.f32 %v176, 50.0
  %v179 = vmul.f32 %v177, 50.0
  %v180 = vsub.f32 1.4, %v98
  %v181 = vsub.f32 1.4, %v99
  %v182 = vmul.f32 %v180, %v180
  %v183 = vmul.f32 %v181, %v181
  %v184 = vmul.f32 %v182, 50.0
  %v185 = vmul.f32 %v183, 50.0
  %vm186 = vcmp.gt.f32.partialorder %v160, 0.0
  %vm187 = vcmp.gt.f32.partialorder %v161, 0.0
  %v188 = vsel %vm186, %v178, -1e+30
  %v189 = vsel %vm187, %v179, -1e+30
  %v190 = vld [vmem:[#allocation2] sm:$0xff]
  %v191 = vld [vmem:[#allocation2 + $0x8] sm:$0xff]
  %vm192 = vcmask 130048
  %v193 = vsel %vm192, %v188, -inf
  %194 = vmax.xlane.f32.xlu0 %v193
  %v195 = vpop.xlane.xlu0 %194
  %v196 = vsel %vm192, %v189, -inf
  %197 = vmax.xlane.f32.xlu0 %v196
  %v198 = vpop.xlane.xlu0 %197
  %v199 = vmax.f32 %v190, %v195
  %v200 = vmax.f32 %v191, %v198
  %202 = vset.pattern.permute.xlu0 0
  %203 = vperm.xlu0 %202, %v199
  %v204 = vpop.permute.xlu0 %203
  %207 = vset.pattern.permute.xlu0 0
  %208 = vperm.xlu0 %207, %v200
  %v209 = vpop.permute.xlu0 %208
  %v211 = vsub.f32 %v188, %v204
  %v212 = vsub.f32 %v189, %v209
  %v213 = vmul.f32 %v211, 1.442695
  %v214 = vpow.pop %v213
  %v215 = vmul.f32 %v212, 1.442695
  %v216 = vpow.pop %v215
  %v217 = vmul.f32 %v214, %v160
  %v218 = vmul.f32 %v216, %v161
  %v219 = vld [vmem:[#allocation3] sm:$0xff]
  %v220 = vld [vmem:[#allocation3 + $0x8] sm:$0xff]
  %v221 = vsub.f32 %v190, %v199
  %v222 = vsub.f32 %v191, %v200
  %v223 = vmul.f32 %v221, 1.442695
  %v224 = vpow.pop %v223
  %v225 = vmul.f32 %v222, 1.442695
  %v226 = vpow.pop %v225
  %v227 = vmul.f32 %v219, %v224
  %v228 = vmul.f32 %v220, %v226
  %v229 = vsel %vm192, %v217, 0.0
  %230 = vadd.xlane.f32.xlu0 %v229
  %v231 = vpop.xlane.xlu0 %230
  %v232 = vsel %vm192, %v218, 0.0
  %233 = vadd.xlane.f32.xlu0 %v232
  %v234 = vpop.xlane.xlu0 %233
  %v235 = vadd.f32 %v227, %v231
  %v236 = vadd.f32 %v228, %v234
  %vm237 = vcmask 7168
  %238 = vst.msk [vmem:[#allocation3] sm:$0xff] %vm237, %v235
  %239 = vst.msk [vmem:[#allocation3 + $0x8] sm:$0xff] %vm237, %v236
  %240 = vst.msk [vmem:[#allocation2] sm:$0xff] %vm237, %v199
  %241 = vst.msk [vmem:[#allocation2 + $0x8] sm:$0xff] %vm237, %v200
  %vm242 = vcmp.gt.f32.partialorder %v172, 0.0
  %vm243 = vcmp.gt.f32.partialorder %v173, 0.0
  %v244 = vsel %vm242, %v184, -1e+30
  %v245 = vsel %vm243, %v185, -1e+30
  %v246 = vld [vmem:[#allocation4] sm:$0xff]
  %v247 = vld [vmem:[#allocation4 + $0x8] sm:$0xff]
  %v248 = vsel %vm192, %v244, -inf
  %249 = vmax.xlane.f32.xlu0 %v248
  %v250 = vpop.xlane.xlu0 %249
  %v251 = vsel %vm192, %v245, -inf
  %252 = vmax.xlane.f32.xlu0 %v251
  %v253 = vpop.xlane.xlu0 %252
  %v254 = vmax.f32 %v246, %v250
  %v255 = vmax.f32 %v247, %v253
  %257 = vset.pattern.permute.xlu0 0
  %258 = vperm.xlu0 %257, %v254
  %v259 = vpop.permute.xlu0 %258
  %262 = vset.pattern.permute.xlu0 0
  %263 = vperm.xlu0 %262, %v255
  %v264 = vpop.permute.xlu0 %263
  %v266 = vsub.f32 %v244, %v259
  %v267 = vsub.f32 %v245, %v264
  %v268 = vmul.f32 %v266, 1.442695
  %v269 = vpow.pop %v268
  %v270 = vmul.f32 %v267, 1.442695
  %v271 = vpow.pop %v270
  %v272 = vmul.f32 %v269, %v172
  %v273 = vmul.f32 %v271, %v173
  %v274 = vld [vmem:[#allocation5] sm:$0xff]
  %v275 = vld [vmem:[#allocation5 + $0x8] sm:$0xff]
  %v276 = vsub.f32 %v246, %v254
  %v277 = vsub.f32 %v247, %v255
  %v278 = vmul.f32 %v276, 1.442695
  %v279 = vpow.pop %v278
  %v280 = vmul.f32 %v277, 1.442695
  %v281 = vpow.pop %v280
  %v282 = vmul.f32 %v274, %v279
  %v283 = vmul.f32 %v275, %v281
  %v284 = vsel %vm192, %v272, 0.0
  %285 = vadd.xlane.f32.xlu0 %v284
  %v286 = vpop.xlane.xlu0 %285
  %v287 = vsel %vm192, %v273, 0.0
  %288 = vadd.xlane.f32.xlu0 %v287
  %v289 = vpop.xlane.xlu0 %288
  %v290 = vadd.f32 %v282, %v286
  %v291 = vadd.f32 %v283, %v289
  %292 = vst.msk [vmem:[#allocation5] sm:$0xff] %vm237, %v290
  %293 = vst.msk [vmem:[#allocation5 + $0x8] sm:$0xff] %vm237, %v291
  %294 = vst.msk [vmem:[#allocation4] sm:$0xff] %vm237, %v254
  %295 = vst.msk [vmem:[#allocation4 + $0x8] sm:$0xff] %vm237, %v255
  // Predicated region
  $region22: #{adaptive_classifier_forward.5} parent=0 // pred_check
    %p296 = pneg %p18
  $region23: #{adaptive_classifier_forward.5} parent=0 // pred_check_branch
    %298 = sbr.rel (%p296) target = $region25
  $region24: #{adaptive_classifier_forward.5} parent=0 // pred_region
    %v299 = vld [vmem:[#allocation3] sm:$0xff]
    %v300 = vld [vmem:[#allocation3 + $0x8] sm:$0xff]
    %vm301 = vcmp.gt.f32.partialorder %v299, 0.0
    %vm302 = vcmp.gt.f32.partialorder %v300, 0.0
    %v303 = vld [vmem:[#allocation2] sm:$0xff]
    %v304 = vld [vmem:[#allocation2 + $0x8] sm:$0xff]
    %v305 = vmax.f32 %v299, 1e-30
    %v306 = vmax.f32 %v300, 1e-30
    %v307 = vlog2.pop %v305
    %v308 = vmul.f32 %v307, 0.6931472
    %v309 = vlog2.pop %v306
    %v310 = vmul.f32 %v309, 0.6931472
    %v311 = vadd.f32 %v303, %v308
    %v312 = vadd.f32 %v304, %v310
    %v313 = vsel %vm301, %v311, 0.0
    %v314 = vsel %vm302, %v312, 0.0
    %v315 = vsel %vm237, %v313, 0.0
    %v316 = vsel %vm237, %v314, 0.0
    %v317 = vadd.f32 %v315, %v316
    %318 = vadd.xlane.f32.xlu0 %v317
    %v319 = vpop.xlane.xlu0 %318
    %v320 = vrot.slane %v319, 4
    %v321 = vadd.f32 %v319, %v320
    %v322 = vrot.slane %v321, 2
    %v323 = vadd.f32 %v321, %v322
    %v324 = vrot.slane %v323, 1
    %v325 = vadd.f32 %v323, %v324
    %s326 = vtos %v325
    %v327 = vsel %vm301, 1, 0
    %v328 = vsel %vm302, 1, 0
    %v329 = vcvt.s32.f32 %v327
    %v330 = vcvt.s32.f32 %v328
    %v331 = vsel %vm237, %v329, 0.0
    %v332 = vsel %vm237, %v330, 0.0
    %v333 = vadd.f32 %v331, %v332
    %334 = vadd.xlane.f32.xlu0 %v333
    %v335 = vpop.xlane.xlu0 %334
    %v336 = vrot.slane %v335, 4
    %v337 = vadd.f32 %v335, %v336
    %v338 = vrot.slane %v337, 2
    %v339 = vadd.f32 %v337, %v338
    %v340 = vrot.slane %v339, 1
    %v341 = vadd.f32 %v339, %v340
    %s342 = vtos %v341
    %v343 = vld [vmem:[#allocation5] sm:$0xff]
    %v344 = vld [vmem:[#allocation5 + $0x8] sm:$0xff]
    %vm345 = vcmp.gt.f32.partialorder %v343, 0.0
    %vm346 = vcmp.gt.f32.partialorder %v344, 0.0
    %v347 = vld [vmem:[#allocation4] sm:$0xff]
    %v348 = vld [vmem:[#allocation4 + $0x8] sm:$0xff]
    %v349 = vmax.f32 %v343, 1e-30
    %v350 = vmax.f32 %v344, 1e-30
    %v351 = vlog2.pop %v349
    %v352 = vmul.f32 %v351, 0.6931472
    %v353 = vlog2.pop %v350
    %v354 = vmul.f32 %v353, 0.6931472
    %v355 = vadd.f32 %v347, %v352
    %v356 = vadd.f32 %v348, %v354
    %v357 = vsel %vm345, %v355, 0.0
    %v358 = vsel %vm346, %v356, 0.0
    %v359 = vsel %vm237, %v357, 0.0
    %v360 = vsel %vm237, %v358, 0.0
    %v361 = vadd.f32 %v359, %v360
    %362 = vadd.xlane.f32.xlu0 %v361
    %v363 = vpop.xlane.xlu0 %362
    %v364 = vrot.slane %v363, 4
    %v365 = vadd.f32 %v363, %v364
    %v366 = vrot.slane %v365, 2
    %v367 = vadd.f32 %v365, %v366
    %v368 = vrot.slane %v367, 1
    %v369 = vadd.f32 %v367, %v368
    %s370 = vtos %v369
    %v371 = vsel %vm345, 1, 0
    %v372 = vsel %vm346, 1, 0
    %v373 = vcvt.s32.f32 %v371
    %v374 = vcvt.s32.f32 %v372
    %v375 = vsel %vm237, %v373, 0.0
    %v376 = vsel %vm237, %v374, 0.0
    %v377 = vadd.f32 %v375, %v376
    %378 = vadd.xlane.f32.xlu0 %v377
    %v379 = vpop.xlane.xlu0 %378
    %v380 = vrot.slane %v379, 4
    %v381 = vadd.f32 %v379, %v380
    %v382 = vrot.slane %v381, 2
    %v383 = vadd.f32 %v381, %v382
    %v384 = vrot.slane %v383, 1
    %v385 = vadd.f32 %v383, %v384
    %s386 = vtos %v385
    %vm387 = vcmp.eq.s32.totalorder %v144, 0
    %v388 = vstv %s326
    %v389 = vsel %vm387, %v388, 0.0
    %vm390 = vcmp.eq.s32.totalorder %v144, 1
    %v391 = vstv %s342
    %v392 = vsel %vm390, %v391, 0.0
    %v393 = vadd.f32 %v389, %v392
    %vm394 = vcmp.eq.s32.totalorder %v144, 2
    %v395 = vstv %s370
    %v396 = vsel %vm394, %v395, 0.0
    %v397 = vadd.f32 %v393, %v396
    %vm398 = vcmp.eq.s32.totalorder %v144, 3
    %v399 = vstv %s386
    %v400 = vsel %vm398, %v399, 0.0
    %v401 = vadd.f32 %v397, %v400
    %402 = vst [vmem:[%s4] sm:$0x1] %v401
  $region25: #{adaptive_classifier_forward.5} parent=0 // pred_fallthru
    _
  // Predicated region
  $region26: #{adaptive_classifier_forward.5} parent=0 // pred_check
    _
  $region27: #{adaptive_classifier_forward.5} parent=0 // pred_check_branch
    %404 = sbr.rel (0) target = $region29
  $region28: #{adaptive_classifier_forward.5} parent=0 // pred_region
    _
  $region29: #{adaptive_classifier_forward.5} parent=0 // pred_fallthru
    _
  // Predicated region
  $region30: #{adaptive_classifier_forward.5} parent=0 // pred_check
    _
  $region31: #{adaptive_classifier_forward.5} parent=0 // pred_check_branch
    %406 = sbr.rel (0) target = $region33
  $region32: #{adaptive_classifier_forward.5} parent=0 // pred_region
    _
  $region33: #{adaptive_classifier_forward.5} parent=0 // pred_fallthru
    _

</llo_original>
